<compile_context>
chip_gen: v5e
topology: v5e:2x2
jax: 0.10.0
libtpu: 0.0.40
codegen_flags: <defaults>
</compile_context>

<pallas_src>
import functools

import jax
import jax.numpy as jnp
from jax import lax
from jax.experimental import pallas as pl
from jax.experimental.pallas import tpu as pltpu


def bclassifier_kernel(c_ref, feats_ref,               # [T, C] f32, [T, K] bf16
                       wq1_ref, bq1_ref,               # [K, Qd] bf16, [1, Qd] f32
                       wq2_ref, bq2_ref,               # [Qd, Qd] bf16, [1, Qd] f32
                       wfcc_ref, bfcc_ref,             # [C*K, C] bf16, [1, C] f32
                       pred_ref,                       # out [1, C]  f32
                       at_ref,                         # out [C, T]  f32 (A^T tile, unnormalized)
                       b_ref,                          # out [C, K]  f32
                       denom_ref,                      # out [C, 1]  f32 softmax denominators
                       runmax_sc,                      # scratch [1, C]  running class max
                       qmax_sc,                        # scratch [C, Qd] running q_max rows
                       densum_sc,                      # scratch [C, 1]  exp-sum accumulator
                       bacc_sc,                        # scratch [C, K]  unnormalized B
                       *, n_valid, tanh_dtype):
    p = pl.program_id(0)               # 0: critical-instance search, 1: attention + bag
    i = pl.program_id(1)               # instance-tile index
    nt = pl.num_programs(1)
    T, K = feats_ref.shape
    Qd = wq2_ref.shape[0]
    C = bfcc_ref.shape[1]
    needs_mask = (n_valid % T) != 0    # static: only the padded last tile needs masking

    @pl.when(jnp.logical_and(p == 0, i == 0))
    def _init():
        runmax_sc[...] = jnp.full_like(runmax_sc, -jnp.inf)
        qmax_sc[...] = jnp.zeros_like(qmax_sc)
        densum_sc[...] = jnp.zeros_like(densum_sc)
        bacc_sc[...] = jnp.zeros_like(bacc_sc)

    feats = feats_ref[...]                                                   # [T, K] bf16

    # ---- q(feats) recomputed per tile in BOTH passes (recompute beats spilling
    #      Q[N, Qd] to HBM between passes on v6e/v7x flop:byte ratios) ---------
    h = jnp.dot(feats, wq1_ref[...], preferred_element_type=jnp.float32) + bq1_ref[...]
    h = jnp.maximum(h, 0.0)                                                  # [T, Qd] ReLU
    q = jnp.dot(h.astype(jnp.bfloat16), wq2_ref[...],
                preferred_element_type=jnp.float32) + bq2_ref[...]
    # bf16 tanh rides the single EUP slot ~2x faster on v6e/v7x (f32 on v5e).
    qb = jnp.tanh(q.astype(tanh_dtype)).astype(jnp.bfloat16)                # [T, Qd]

    # ---- pass 0: running per-class (max score, q_max row) --------------------
    @pl.when(p == 0)
    def _pass0():
        c_tile = c_ref[...]                                                  # [T, C] f32 (exact)
        row = lax.broadcasted_iota(jnp.int32, (T, C), 0)
        if needs_mask:
            c_tile = jnp.where(i * T + row < n_valid, c_tile, -jnp.inf)
        tmax = jnp.max(c_tile, axis=0, keepdims=True)                        # [1, C]
        # first row of this tile achieving the tile max (matches jnp.argmax)
        amin = jnp.min(jnp.where(c_tile == tmax, row, T), axis=0, keepdims=True)
        onehot = (row == amin).astype(jnp.bfloat16)                          # [T, C] exact 0/1
        qcand = jnp.einsum('nc,nq->cq', onehot, qb,
                           preferred_element_type=jnp.float32)               # [C, Qd]
        # strict '>' so earlier tiles win ties -> global first-argmax.
        better = (tmax > runmax_sc[...]).T                                   # [C, 1]
        qmax_sc[...] = jnp.where(better, qcand, qmax_sc[...])
        runmax_sc[...] = jnp.maximum(runmax_sc[...], tmax)

    # ---- pass 1: attention (transposed, unnormalized) + bag accumulation -----
    @pl.when(p == 1)
    def _pass1():
        qmaxb = qmax_sc[...].astype(jnp.bfloat16)                            # [C, Qd] fixed now
        # scores are tanh-bounded: |s| <= Qd/sqrt(Qd) = sqrt(Qd) ~ 11.3, so exp
        # cannot overflow/underflow badly and the cross-lane max-subtraction
        # (and a full online-softmax) is skipped on purpose.
        st = jnp.einsum('cq,nq->cn', qmaxb, qb,
                        preferred_element_type=jnp.float32) * (Qd ** -0.5)   # [C, T]
        e = jnp.exp(st)                                                      # f32 exp (precision)
        if needs_mask:
            col = lax.broadcasted_iota(jnp.int32, (C, T), 1)
            e = jnp.where(i * T + col < n_valid, e, 0.0)
        at_ref[...] = e                                                      # lane-dense store
        densum_sc[...] += jnp.sum(e, axis=1, keepdims=True)                  # [C, 1]
        bacc_sc[...] += jnp.dot(e.astype(jnp.bfloat16), feats,
                                preferred_element_type=jnp.float32)          # [C, K]

    # ---- finalize on the very last grid step ----------------------------------
    @pl.when(jnp.logical_and(p == 1, i == nt - 1))
    def _finalize():
        denom = densum_sc[...]                                               # [C, 1]
        denom_ref[...] = denom
        bag = bacc_sc[...] * (1.0 / denom)                                   # exact normalization
        b_ref[...] = bag                                                     # [C, K]
        # fcc Conv1d(C, C, kernel_size=K) == flat contraction over (c, k):
        # row-major flatten of bag (static concat over tiny C == reshape(1, C*K))
        # then one bf16 MXU push against the host-packed [C*K, C] weight.
        bag_flat = jnp.concatenate([bag[cc:cc + 1, :] for cc in range(C)], axis=1)
        pred_ref[...] = (jnp.dot(bag_flat.astype(jnp.bfloat16), wfcc_ref[...],
                                 preferred_element_type=jnp.float32)
                         + bfcc_ref[...])


def pack_params(params):
    """One-time weight packing/casting (outside the per-call path)."""
    C, _, K = params['w_fcc'].shape            # Conv1d weight [C_out, C_in, K]
    return {
        'wq1': params['wq1'].astype(jnp.bfloat16),
        'bq1': params['bq1'].astype(jnp.float32),
        'wq2': params['wq2'].astype(jnp.bfloat16),
        'bq2': params['bq2'].astype(jnp.float32),
        # [C_out, C_in, K] -> [C_in*K, C_out] so pred = flatten(B)[1, C*K] @ wfcc
        'wfcc': jnp.transpose(params['w_fcc'], (1, 2, 0)).reshape(C * K, C).astype(jnp.bfloat16),
        'bfcc': params['b_fcc'].astype(jnp.float32),
    }


@functools.partial(jax.jit, static_argnames=('tile_n', 'tanh_dtype'))
def bclassifier_forward(feats, c, packed, *, tile_n=512, tanh_dtype=jnp.bfloat16):
    """Returns (prediction [1,C], A [N,C], B [1,C,K]) like BClassifier.forward."""
    N, K = feats.shape
    C = c.shape[1]
    Qd = packed['wq2'].shape[0]
    assert tile_n % 128 == 0, "tile_n must be lane-aligned for the [C, T] A^T blocks"

    # Instance-tile size: one tile for small bags, tile_n for large ones.
    if N <= tile_n:
        T = max(8, ((N + 7) // 8) * 8)
    else:
        T = tile_n
    n_pad = ((N + T - 1) // T) * T
    if n_pad != N:
        feats = jnp.pad(feats, ((0, n_pad - N), (0, 0)))
        c = jnp.pad(c, ((0, n_pad - N), (0, 0)))
    nt = n_pad // T

    kernel = functools.partial(bclassifier_kernel, n_valid=N, tanh_dtype=tanh_dtype)

    grid_spec = pltpu.PrefetchScalarGridSpec(
        num_scalar_prefetch=0,
        grid=(2, nt),                                        # (pass, instance tile)
        in_specs=[
            # c is only consumed in pass 0; pin it to block 0 during pass 1 so it
            # is not re-streamed from HBM.
            pl.BlockSpec((T, C), lambda p, i: (i * (1 - p), 0)),
            pl.BlockSpec((T, K), lambda p, i: (i, 0)),        # feats, both passes
            pl.BlockSpec((K, Qd), lambda p, i: (0, 0)),       # wq1 (resident)
            pl.BlockSpec((1, Qd), lambda p, i: (0, 0)),       # bq1
            pl.BlockSpec((Qd, Qd), lambda p, i: (0, 0)),      # wq2
            pl.BlockSpec((1, Qd), lambda p, i: (0, 0)),       # bq2
            pl.BlockSpec((C * K, C), lambda p, i: (0, 0)),    # wfcc (flattened)
            pl.BlockSpec((1, C), lambda p, i: (0, 0)),        # bfcc
        ],
        out_specs=(
            pl.BlockSpec((1, C), lambda p, i: (0, 0)),        # pred (resident)
            # A^T: parked on block 0 during pass 0 (no writeback of unwritten
            # buffers), streamed as lane-dense [C, T] tiles during pass 1.
            pl.BlockSpec((C, T), lambda p, i: (0, i * p)),
            pl.BlockSpec((C, K), lambda p, i: (0, 0)),        # B (resident)
            pl.BlockSpec((C, 1), lambda p, i: (0, 0)),        # softmax denominators
        ),
        scratch_shapes=[
            pltpu.VMEM((1, C), jnp.float32),    # running per-class max score
            pltpu.VMEM((C, Qd), jnp.float32),   # running q_max rows
            pltpu.VMEM((C, 1), jnp.float32),    # exp-sum accumulator
            pltpu.VMEM((C, K), jnp.float32),    # unnormalized B accumulator
        ],
    )

    flops = n_pad * (2 * (2 * K * Qd + 2 * Qd * Qd) + 4 * C * Qd + 2 * C * K)
    transcendentals = n_pad * (2 * Qd + C)
    bytes_accessed = (n_pad * (2 * 2 * K + 4 * C + 4 * C)          # feats x2, c, A^T
                      + 2 * (K * Qd + Qd * Qd) + 2 * C * K * C + 4 * (C * K + 4 * C))

    out_shapes = (
        jax.ShapeDtypeStruct((1, C), jnp.float32),         # prediction_bag
        jax.ShapeDtypeStruct((C, n_pad), jnp.float32),     # unnormalized A^T
        jax.ShapeDtypeStruct((C, K), jnp.float32),         # B
        jax.ShapeDtypeStruct((C, 1), jnp.float32),         # softmax denominators
    )

    pred, at_unnorm, bag, denom = pl.pallas_call(
        kernel,
        out_shape=out_shapes,
        grid_spec=grid_spec,
        compiler_params=pltpu.CompilerParams(
            dimension_semantics=("arbitrary", "arbitrary"),   # sequential passes + reduction tiles
            vmem_limit_bytes=32 * 1024 * 1024,                # safe on v5e/v6e/v7x budgets
        ),
        cost_estimate=pl.CostEstimate(flops=flops,
                                      transcendentals=transcendentals,
                                      bytes_accessed=bytes_accessed),
    )(c, feats.astype(jnp.bfloat16),
      packed['wq1'], packed['bq1'], packed['wq2'], packed['bq2'],
      packed['wfcc'], packed['bfcc'])

    # exact softmax normalization + back to the module's [N, C] attention layout
    A = (at_unnorm[:, :N] / denom).T
    return pred, A, bag[None, :, :]


def bclassifier_reference(feats, c, params):
    """Pure-JAX reference mirroring the PyTorch math with the kernel's
    bf16-input / f32-accumulate matmul policy."""
    mm = lambda a, b: jnp.dot(a.astype(jnp.bfloat16), b.astype(jnp.bfloat16),
                              preferred_element_type=jnp.float32)
    h = jnp.maximum(mm(feats, params['wq1']) + params['bq1'], 0.0)
    Q = jnp.tanh(mm(h, params['wq2']) + params['bq2'])
    V = feats
    idx = jnp.argmax(c, axis=0)            # torch.sort desc, row 0 == first max
    q_max = Q[idx]                         # q is row-wise => q(feats[idx]) == Q[idx]
    A = mm(Q, q_max.T) * (Q.shape[1] ** -0.5)
    A = jax.nn.softmax(A, axis=0)
    B = mm(A.T, V)
    pred = jnp.einsum('ck,ock->o', B, params['w_fcc'])[None, :] + params['b_fcc']
    return pred, A, B[None, :, :]


if __name__ == "__main__":
    # N chosen > tile so the multi-tile + padded-last-tile paths are exercised.
    N, K, C, Qd = 300, 128, 2, 128
    TILE = 128

    key = jax.random.PRNGKey(0)
    ks = jax.random.split(key, 8)
    feats = jax.random.normal(ks[0], (N, K), dtype=jnp.float32)
    c = jax.random.normal(ks[1], (N, C), dtype=jnp.float32)   # instance scores (module input)

    params = {
        'wq1':   jax.random.normal(ks[2], (K, Qd), dtype=jnp.float32) * 0.05,
        'bq1':   jax.random.normal(ks[3], (1, Qd), dtype=jnp.float32) * 0.01,
        'wq2':   jax.random.normal(ks[4], (Qd, Qd), dtype=jnp.float32) * 0.05,
        'bq2':   jax.random.normal(ks[5], (1, Qd), dtype=jnp.float32) * 0.01,
        # PyTorch Conv1d(C, C, kernel_size=K) weight layout [C_out, C_in, K]
        'w_fcc': jax.random.normal(ks[6], (C, C, K), dtype=jnp.float32) * 0.05,
        'b_fcc': jax.random.normal(ks[7], (1, C), dtype=jnp.float32) * 0.01,
    }

    packed = pack_params(params)   # once, outside the per-call path
    pred, A, B = jax.block_until_ready(
        bclassifier_forward(feats, c, packed, tile_n=TILE))

    r_pred, r_A, r_B = bclassifier_reference(feats, c, params)
    assert pred.shape == (1, C) and A.shape == (N, C) and B.shape == (1, C, K)
    for got, ref in ((pred, r_pred), (A, r_A), (B, r_B)):
        assert jnp.all(jnp.isfinite(got))
        assert jnp.allclose(got, ref, rtol=2e-2, atol=2e-2)
    # attention columns must sum to 1 (exact normalization, no approx reciprocal)
    assert jnp.allclose(jnp.sum(A, axis=0), jnp.ones((C,)), atol=1e-4)

    print("KERNEL_OK")
</pallas_src>

<mosaic_0001>
module attributes {stable_mosaic.version = 11 : i64} {
  func.func @bclassifier_kernel(%arg0: i32, %arg1: i32, %arg2: memref<128x2xf32, #tpu.memory_space<vmem>>, %arg3: memref<128x128xbf16, #tpu.memory_space<vmem>>, %arg4: memref<128x128xbf16, #tpu.memory_space<vmem>>, %arg5: memref<1x128xf32, #tpu.memory_space<vmem>>, %arg6: memref<128x128xbf16, #tpu.memory_space<vmem>>, %arg7: memref<1x128xf32, #tpu.memory_space<vmem>>, %arg8: memref<256x2xbf16, #tpu.memory_space<vmem>>, %arg9: memref<1x2xf32, #tpu.memory_space<vmem>>, %arg10: memref<1x2xf32, #tpu.memory_space<vmem>>, %arg11: memref<2x128xf32, #tpu.memory_space<vmem>>, %arg12: memref<2x128xf32, #tpu.memory_space<vmem>>, %arg13: memref<2x1xf32, #tpu.memory_space<vmem>>, %arg14: memref<1x2xf32, #tpu.memory_space<vmem>>, %arg15: memref<2x128xf32, #tpu.memory_space<vmem>>, %arg16: memref<2x1xf32, #tpu.memory_space<vmem>>, %arg17: memref<2x128xf32, #tpu.memory_space<vmem>>) attributes {dimension_semantics = [#tpu.dimension_semantics<arbitrary>, #tpu.dimension_semantics<arbitrary>], iteration_bounds = array<i64: 2, 3>, scalar_prefetch = 0 : i64, scratch_operands = 4 : i64, tpu.core_type = #tpu.core_type<tc>, window_params = [{transform_indices = @transform_0, window_bounds = array<i64: 128, 2>}, {transform_indices = @transform_1, window_bounds = array<i64: 128, 128>}, {pipeline_mode = #tpu.pipeline_mode<synchronous>, transform_indices = @transform_2, window_bounds = array<i64: 128, 128>}, {pipeline_mode = #tpu.pipeline_mode<synchronous>, transform_indices = @transform_3, window_bounds = array<i64: 1, 128>}, {pipeline_mode = #tpu.pipeline_mode<synchronous>, transform_indices = @transform_4, window_bounds = array<i64: 128, 128>}, {pipeline_mode = #tpu.pipeline_mode<synchronous>, transform_indices = @transform_5, window_bounds = array<i64: 1, 128>}, {pipeline_mode = #tpu.pipeline_mode<synchronous>, transform_indices = @transform_6, window_bounds = array<i64: 256, 2>}, {pipeline_mode = #tpu.pipeline_mode<synchronous>, transform_indices = @transform_7, window_bounds = array<i64: 1, 2>}, {pipeline_mode = #tpu.pipeline_mode<synchronous>, transform_indices = @transform_8, window_bounds = array<i64: 1, 2>}, {transform_indices = @transform_9, window_bounds = array<i64: 2, 128>}, {pipeline_mode = #tpu.pipeline_mode<synchronous>, transform_indices = @transform_10, window_bounds = array<i64: 2, 128>}, {pipeline_mode = #tpu.pipeline_mode<synchronous>, transform_indices = @transform_11, window_bounds = array<i64: 2, 1>}]} {
    %c0_i32 = arith.constant 0 : i32
    %0 = arith.cmpi eq, %arg0, %c0_i32 : i32
    %c0_i32_0 = arith.constant 0 : i32
    %1 = arith.cmpi eq, %arg1, %c0_i32_0 : i32
    %2 = arith.andi %0, %1 : i1
    %3 = arith.extui %2 : i1 to i32
    %c0_i32_1 = arith.constant 0 : i32
    %4 = arith.cmpi ne, %3, %c0_i32_1 : i32
    scf.if %4 {
      %cst_18 = arith.constant 0xFF800000 : f32
      %32 = vector.broadcast %cst_18 : f32 to vector<1x2xf32>
      %c0_19 = arith.constant 0 : index
      %c0_20 = arith.constant 0 : index
      %33 = vector.load %arg14[%c0_19, %c0_20] : memref<1x2xf32, #tpu.memory_space<vmem>>, vector<1x2xf32>
      tpu.vector_store %arg14[%c0_19, %c0_20], %32 {strides = array<i32>} : memref<1x2xf32, #tpu.memory_space<vmem>>, vector<1x2xf32>,
      %cst_21 = arith.constant 0.000000e+00 : f32
      %34 = vector.broadcast %cst_21 : f32 to vector<2x128xf32>
      %c0_22 = arith.constant 0 : index
      %c0_23 = arith.constant 0 : index
      %35 = vector.load %arg15[%c0_22, %c0_23] : memref<2x128xf32, #tpu.memory_space<vmem>>, vector<2x128xf32>
      tpu.vector_store %arg15[%c0_22, %c0_23], %34 {strides = array<i32>} : memref<2x128xf32, #tpu.memory_space<vmem>>, vector<2x128xf32>,
      %cst_24 = arith.constant 0.000000e+00 : f32
      %36 = vector.broadcast %cst_24 : f32 to vector<2x1xf32>
      %c0_25 = arith.constant 0 : index
      %c0_26 = arith.constant 0 : index
      %37 = vector.load %arg16[%c0_25, %c0_26] : memref<2x1xf32, #tpu.memory_space<vmem>>, vector<2x1xf32>
      tpu.vector_store %arg16[%c0_25, %c0_26], %36 {strides = array<i32>} : memref<2x1xf32, #tpu.memory_space<vmem>>, vector<2x1xf32>,
      %cst_27 = arith.constant 0.000000e+00 : f32
      %38 = vector.broadcast %cst_27 : f32 to vector<2x128xf32>
      %c0_28 = arith.constant 0 : index
      %c0_29 = arith.constant 0 : index
      %39 = vector.load %arg17[%c0_28, %c0_29] : memref<2x128xf32, #tpu.memory_space<vmem>>, vector<2x128xf32>
      tpu.vector_store %arg17[%c0_28, %c0_29], %38 {strides = array<i32>} : memref<2x128xf32, #tpu.memory_space<vmem>>, vector<2x128xf32>,
    } else {
    }
    %c0 = arith.constant 0 : index
    %c0_2 = arith.constant 0 : index
    %5 = vector.load %arg3[%c0, %c0_2] : memref<128x128xbf16, #tpu.memory_space<vmem>>, vector<128x128xbf16>
    %c0_3 = arith.constant 0 : index
    %c0_4 = arith.constant 0 : index
    %6 = vector.load %arg4[%c0_3, %c0_4] : memref<128x128xbf16, #tpu.memory_space<vmem>>, vector<128x128xbf16>
    %cst = arith.constant dense<0.000000e+00> : vector<128x128xf32>
    %7 = tpu.matmul %5, %6, %cst {dimension_numbers = #tpu.dot_dimension_numbers<[1], [0], [0], [1], [0, 0, 1, 1], [], []>} : vector<128x128xbf16>, vector<128x128xbf16>, vector<128x128xf32> -> vector<128x128xf32>
    %c0_5 = arith.constant 0 : index
    %c0_6 = arith.constant 0 : index
    %8 = vector.load %arg5[%c0_5, %c0_6] : memref<1x128xf32, #tpu.memory_space<vmem>>, vector<1x128xf32>
    %9 = vector.broadcast %8 : vector<1x128xf32> to vector<128x128xf32>
    %10 = arith.addf %7, %9 : vector<128x128xf32>
    %cst_7 = arith.constant 0.000000e+00 : f32
    %11 = vector.broadcast %cst_7 : f32 to vector<128x128xf32>
    %12 = arith.maximumf %10, %11 : vector<128x128xf32>
    %13 = arith.truncf %12 : vector<128x128xf32> to vector<128x128xbf16>
    %c0_8 = arith.constant 0 : index
    %c0_9 = arith.constant 0 : index
    %14 = vector.load %arg6[%c0_8, %c0_9] : memref<128x128xbf16, #tpu.memory_space<vmem>>, vector<128x128xbf16>
    %cst_10 = arith.constant dense<0.000000e+00> : vector<128x128xf32>
    %15 = tpu.matmul %13, %14, %cst_10 {dimension_numbers = #tpu.dot_dimension_numbers<[1], [0], [0], [1], [0, 0, 1, 1], [], []>} : vector<128x128xbf16>, vector<128x128xbf16>, vector<128x128xf32> -> vector<128x128xf32>
    %c0_11 = arith.constant 0 : index
    %c0_12 = arith.constant 0 : index
    %16 = vector.load %arg7[%c0_11, %c0_12] : memref<1x128xf32, #tpu.memory_space<vmem>>, vector<1x128xf32>
    %17 = vector.broadcast %16 : vector<1x128xf32> to vector<128x128xf32>
    %18 = arith.addf %15, %17 : vector<128x128xf32>
    %19 = arith.truncf %18 : vector<128x128xf32> to vector<128x128xbf16>
    %20 = math.tanh %19 : vector<128x128xbf16>
    %c0_i32_13 = arith.constant 0 : i32
    %21 = arith.cmpi eq, %arg0, %c0_i32_13 : i32
    %22 = arith.extui %21 : i1 to i32
    %c0_i32_14 = arith.constant 0 : i32
    %23 = arith.cmpi ne, %22, %c0_i32_14 : i32
    scf.if %23 {
      %c0_18 = arith.constant 0 : index
      %c0_19 = arith.constant 0 : index
      %32 = vector.load %arg2[%c0_18, %c0_19] : memref<128x2xf32, #tpu.memory_space<vmem>>, vector<128x2xf32>
      %33 = tpu.iota {dimensions = array<i32: 0>} : vector<128x2xi32>
      %c128_i32 = arith.constant 128 : i32
      %34 = arith.muli %arg1, %c128_i32 : i32
      %35 = vector.broadcast %34 : i32 to vector<128x2xi32>
      %36 = arith.addi %35, %33 : vector<128x2xi32>
      %c300_i32 = arith.constant 300 : i32
      %37 = vector.broadcast %c300_i32 : i32 to vector<128x2xi32>
      %38 = arith.cmpi slt, %36, %37 : vector<128x2xi32>
      %cst_20 = arith.constant 0xFF800000 : f32
      %39 = vector.broadcast %cst_20 : f32 to vector<128x2xf32>
      %40 = arith.select %38, %32, %39 : vector<128x2xi1>, vector<128x2xf32>
      %cst_21 = arith.constant dense<0xFF800000> : vector<2xf32>
      %41 = vector.multi_reduction <maximumf>, %40, %cst_21 [0] : vector<128x2xf32> to vector<2xf32>
      %42 = vector.shape_cast %41 : vector<2xf32> to vector<1x2xf32>
      %43 = vector.broadcast %42 : vector<1x2xf32> to vector<128x2xf32>
      %44 = arith.cmpf oeq, %40, %43 : vector<128x2xf32>
      %c128_i32_22 = arith.constant 128 : i32
      %45 = vector.broadcast %c128_i32_22 : i32 to vector<128x2xi32>
      %46 = arith.select %44, %33, %45 : vector<128x2xi1>, vector<128x2xi32>
      %cst_23 = arith.constant dense<2147483647> : vector<2xi32>
      %47 = vector.multi_reduction <minsi>, %46, %cst_23 [0] : vector<128x2xi32> to vector<2xi32>
      %48 = vector.shape_cast %47 : vector<2xi32> to vector<1x2xi32>
      %49 = vector.broadcast %48 : vector<1x2xi32> to vector<128x2xi32>
      %50 = arith.cmpi eq, %33, %49 : vector<128x2xi32>
      %51 = arith.extui %50 : vector<128x2xi1> to vector<128x2xi32>
      %52 = arith.sitofp %51 : vector<128x2xi32> to vector<128x2xf32>
      %53 = arith.truncf %52 : vector<128x2xf32> to vector<128x2xbf16>
      "tpu.trace_start"() <{level = 10 : i32, message = "nc,nq->cq"}> : () -> ()
      %cst_24 = arith.constant dense<0.000000e+00> : vector<2x128xf32>
      %54 = tpu.matmul %53, %20, %cst_24 {dimension_numbers = #tpu.dot_dimension_numbers<[0], [0], [1], [1], [0, 1, 1, 1], [], []>} : vector<128x2xbf16>, vector<128x128xbf16>, vector<2x128xf32> -> vector<2x128xf32>
      "tpu.trace_stop"() : () -> ()
      %c0_25 = arith.constant 0 : index
      %c0_26 = arith.constant 0 : index
      %55 = vector.load %arg14[%c0_25, %c0_26] : memref<1x2xf32, #tpu.memory_space<vmem>>, vector<1x2xf32>
      %56 = arith.cmpf ogt, %42, %55 : vector<1x2xf32>
      %57 = tpu.transpose %56, [1, 0] : vector<1x2xi1> -> vector<2x1xi1>
      %c0_27 = arith.constant 0 : index
      %c0_28 = arith.constant 0 : index
      %58 = vector.load %arg15[%c0_27, %c0_28] : memref<2x128xf32, #tpu.memory_space<vmem>>, vector<2x128xf32>
      %59 = vector.shape_cast %57 : vector<2x1xi1> to vector<2x1xi1>
      %60 = vector.broadcast %59 : vector<2x1xi1> to vector<2x128xi1>
      %61 = arith.select %60, %54, %58 : vector<2x128xi1>, vector<2x128xf32>
      %c0_29 = arith.constant 0 : index
      %c0_30 = arith.constant 0 : index
      %62 = vector.load %arg15[%c0_29, %c0_30] : memref<2x128xf32, #tpu.memory_space<vmem>>, vector<2x128xf32>
      tpu.vector_store %arg15[%c0_29, %c0_30], %61 {strides = array<i32>} : memref<2x128xf32, #tpu.memory_space<vmem>>, vector<2x128xf32>,
      %c0_31 = arith.constant 0 : index
      %c0_32 = arith.constant 0 : index
      %63 = vector.load %arg14[%c0_31, %c0_32] : memref<1x2xf32, #tpu.memory_space<vmem>>, vector<1x2xf32>
      %64 = arith.maximumf %63, %42 : vector<1x2xf32>
      %c0_33 = arith.constant 0 : index
      %c0_34 = arith.constant 0 : index
      %65 = vector.load %arg14[%c0_33, %c0_34] : memref<1x2xf32, #tpu.memory_space<vmem>>, vector<1x2xf32>
      tpu.vector_store %arg14[%c0_33, %c0_34], %64 {strides = array<i32>} : memref<1x2xf32, #tpu.memory_space<vmem>>, vector<1x2xf32>,
    } else {
    }
    %c1_i32 = arith.constant 1 : i32
    %24 = arith.cmpi eq, %arg0, %c1_i32 : i32
    %25 = arith.extui %24 : i1 to i32
    %c0_i32_15 = arith.constant 0 : i32
    %26 = arith.cmpi ne, %25, %c0_i32_15 : i32
    scf.if %26 {
      %c0_18 = arith.constant 0 : index
      %c0_19 = arith.constant 0 : index
      %32 = vector.load %arg15[%c0_18, %c0_19] : memref<2x128xf32, #tpu.memory_space<vmem>>, vector<2x128xf32>
      %33 = arith.truncf %32 : vector<2x128xf32> to vector<2x128xbf16>
      "tpu.trace_start"() <{level = 10 : i32, message = "cq,nq->cn"}> : () -> ()
      %cst_20 = arith.constant dense<0.000000e+00> : vector<2x128xf32>
      %34 = tpu.matmul %33, %20, %cst_20 {dimension_numbers = #tpu.dot_dimension_numbers<[1], [1], [0], [0], [0, 0, 1, 0], [], []>} : vector<2x128xbf16>, vector<128x128xbf16>, vector<2x128xf32> -> vector<2x128xf32>
      "tpu.trace_stop"() : () -> ()
      %cst_21 = arith.constant 0.0883883461 : f32
      %35 = vector.broadcast %cst_21 : f32 to vector<2x128xf32>
      %36 = arith.mulf %34, %35 : vector<2x128xf32>
      %37 = math.exp %36 : vector<2x128xf32>
      %38 = tpu.iota {dimensions = array<i32: 1>} : vector<2x128xi32>
      %c128_i32 = arith.constant 128 : i32
      %39 = arith.muli %arg1, %c128_i32 : i32
      %40 = vector.broadcast %39 : i32 to vector<2x128xi32>
      %41 = arith.addi %40, %38 : vector<2x128xi32>
      %c300_i32 = arith.constant 300 : i32
      %42 = vector.broadcast %c300_i32 : i32 to vector<2x128xi32>
      %43 = arith.cmpi slt, %41, %42 : vector<2x128xi32>
      %cst_22 = arith.constant 0.000000e+00 : f32
      %44 = vector.broadcast %cst_22 : f32 to vector<2x128xf32>
      %45 = arith.select %43, %37, %44 : vector<2x128xi1>, vector<2x128xf32>
      %c0_23 = arith.constant 0 : index
      %c0_24 = arith.constant 0 : index
      %46 = vector.load %arg11[%c0_23, %c0_24] : memref<2x128xf32, #tpu.memory_space<vmem>>, vector<2x128xf32>
      tpu.vector_store %arg11[%c0_23, %c0_24], %45 {strides = array<i32>} : memref<2x128xf32, #tpu.memory_space<vmem>>, vector<2x128xf32>,
      %c0_25 = arith.constant 0 : index
      %c0_26 = arith.constant 0 : index
      %47 = vector.load %arg16[%c0_25, %c0_26] : memref<2x1xf32, #tpu.memory_space<vmem>>, vector<2x1xf32>
      %cst_27 = arith.constant dense<0.000000e+00> : vector<2xf32>
      %48 = vector.multi_reduction <add>, %45, %cst_27 [1] : vector<2x128xf32> to vector<2xf32>
      %49 = vector.shape_cast %48 : vector<2xf32> to vector<2x1xf32>
      %50 = arith.addf %47, %49 : vector<2x1xf32>
      %c0_28 = arith.constant 0 : index
      %c0_29 = arith.constant 0 : index
      %51 = vector.load %arg16[%c0_28, %c0_29] : memref<2x1xf32, #tpu.memory_space<vmem>>, vector<2x1xf32>
      tpu.vector_store %arg16[%c0_28, %c0_29], %50 {strides = array<i32>} : memref<2x1xf32, #tpu.memory_space<vmem>>, vector<2x1xf32>,
      %c0_30 = arith.constant 0 : index
      %c0_31 = arith.constant 0 : index
      %52 = vector.load %arg17[%c0_30, %c0_31] : memref<2x128xf32, #tpu.memory_space<vmem>>, vector<2x128xf32>
      %53 = arith.truncf %45 : vector<2x128xf32> to vector<2x128xbf16>
      %cst_32 = arith.constant dense<0.000000e+00> : vector<2x128xf32>
      %54 = tpu.matmul %53, %5, %cst_32 {dimension_numbers = #tpu.dot_dimension_numbers<[1], [0], [0], [1], [0, 0, 1, 1], [], []>} : vector<2x128xbf16>, vector<128x128xbf16>, vector<2x128xf32> -> vector<2x128xf32>
      %55 = arith.addf %52, %54 : vector<2x128xf32>
      %c0_33 = arith.constant 0 : index
      %c0_34 = arith.constant 0 : index
      %56 = vector.load %arg17[%c0_33, %c0_34] : memref<2x128xf32, #tpu.memory_space<vmem>>, vector<2x128xf32>
      tpu.vector_store %arg17[%c0_33, %c0_34], %55 {strides = array<i32>} : memref<2x128xf32, #tpu.memory_space<vmem>>, vector<2x128xf32>,
    } else {
    }
    %c1_i32_16 = arith.constant 1 : i32
    %27 = arith.cmpi eq, %arg0, %c1_i32_16 : i32
    %c2_i32 = arith.constant 2 : i32
    %28 = arith.cmpi eq, %arg1, %c2_i32 : i32
    %29 = arith.andi %27, %28 : i1
    %30 = arith.extui %29 : i1 to i32
    %c0_i32_17 = arith.constant 0 : i32
    %31 = arith.cmpi ne, %30, %c0_i32_17 : i32
    scf.if %31 {
      %c0_18 = arith.constant 0 : index
      %c0_19 = arith.constant 0 : index
      %32 = vector.load %arg16[%c0_18, %c0_19] : memref<2x1xf32, #tpu.memory_space<vmem>>, vector<2x1xf32>
      %c0_20 = arith.constant 0 : index
      %c0_21 = arith.constant 0 : index
      %33 = vector.load %arg13[%c0_20, %c0_21] : memref<2x1xf32, #tpu.memory_space<vmem>>, vector<2x1xf32>
      tpu.vector_store %arg13[%c0_20, %c0_21], %32 {strides = array<i32>} : memref<2x1xf32, #tpu.memory_space<vmem>>, vector<2x1xf32>,
      %c0_22 = arith.constant 0 : index
      %c0_23 = arith.constant 0 : index
      %34 = vector.load %arg17[%c0_22, %c0_23] : memref<2x128xf32, #tpu.memory_space<vmem>>, vector<2x128xf32>
      %cst_24 = arith.constant 1.000000e+00 : f32
      %35 = vector.broadcast %cst_24 : f32 to vector<2x1xf32>
      %36 = arith.divf %35, %32 : vector<2x1xf32>
      %37 = vector.broadcast %36 : vector<2x1xf32> to vector<2x128xf32>
      %38 = arith.mulf %34, %37 : vector<2x128xf32>
      %c0_25 = arith.constant 0 : index
      %c0_26 = arith.constant 0 : index
      %39 = vector.load %arg12[%c0_25, %c0_26] : memref<2x128xf32, #tpu.memory_space<vmem>>, vector<2x128xf32>
      tpu.vector_store %arg12[%c0_25, %c0_26], %38 {strides = array<i32>} : memref<2x128xf32, #tpu.memory_space<vmem>>, vector<2x128xf32>,
      %40 = vector.extract_strided_slice %38 {offsets = [0, 0], sizes = [1, 128], strides = [1, 1]} : vector<2x128xf32> to vector<1x128xf32>
      %41 = vector.extract_strided_slice %38 {offsets = [1, 0], sizes = [1, 128], strides = [1, 1]} : vector<2x128xf32> to vector<1x128xf32>
      %42 = tpu.concatenate %40, %41 in 1 : vector<1x128xf32>, vector<1x128xf32> -> vector<1x256xf32>
      %43 = arith.truncf %42 : vector<1x256xf32> to vector<1x256xbf16>
      %c0_27 = arith.constant 0 : index
      %c0_28 = arith.constant 0 : index
      %44 = vector.load %arg8[%c0_27, %c0_28] : memref<256x2xbf16, #tpu.memory_space<vmem>>, vector<256x2xbf16>
      %cst_29 = arith.constant dense<0.000000e+00> : vector<1x2xf32>
      %45 = tpu.matmul %43, %44, %cst_29 {dimension_numbers = #tpu.dot_dimension_numbers<[1], [0], [0], [1], [0, 0, 1, 1], [], []>} : vector<1x256xbf16>, vector<256x2xbf16>, vector<1x2xf32> -> vector<1x2xf32>
      %c0_30 = arith.constant 0 : index
      %c0_31 = arith.constant 0 : index
      %46 = vector.load %arg9[%c0_30, %c0_31] : memref<1x2xf32, #tpu.memory_space<vmem>>, vector<1x2xf32>
      %47 = arith.addf %45, %46 : vector<1x2xf32>
      %c0_32 = arith.constant 0 : index
      %c0_33 = arith.constant 0 : index
      %48 = vector.load %arg10[%c0_32, %c0_33] : memref<1x2xf32, #tpu.memory_space<vmem>>, vector<1x2xf32>
      tpu.vector_store %arg10[%c0_32, %c0_33], %47 {strides = array<i32>} : memref<1x2xf32, #tpu.memory_space<vmem>>, vector<1x2xf32>,
    } else {
    }
    return
  }
  func.func @transform_0(%arg0: i32, %arg1: i32) -> (i32, i32) {
    %c1_i32 = arith.constant 1 : i32
    %0 = arith.subi %c1_i32, %arg0 : i32
    %1 = arith.muli %arg1, %0 : i32
    %c0_i32 = arith.constant 0 : i32
    %c0_i32_0 = arith.constant 0 : i32
    return %1, %c0_i32 : i32, i32
  }
  func.func @transform_1(%arg0: i32, %arg1: i32) -> (i32, i32) {
    %c0_i32 = arith.constant 0 : i32
    %c0_i32_0 = arith.constant 0 : i32
    return %arg1, %c0_i32 : i32, i32
  }
  func.func @transform_2(%arg0: i32, %arg1: i32) -> (i32, i32) {
    %c0_i32 = arith.constant 0 : i32
    %c0_i32_0 = arith.constant 0 : i32
    %c0_i32_1 = arith.constant 0 : i32
    return %c0_i32, %c0_i32_0 : i32, i32
  }
  func.func @transform_3(%arg0: i32, %arg1: i32) -> (i32, i32) {
    %c0_i32 = arith.constant 0 : i32
    %c0_i32_0 = arith.constant 0 : i32
    %c0_i32_1 = arith.constant 0 : i32
    return %c0_i32, %c0_i32_0 : i32, i32
  }
  func.func @transform_4(%arg0: i32, %arg1: i32) -> (i32, i32) {
    %c0_i32 = arith.constant 0 : i32
    %c0_i32_0 = arith.constant 0 : i32
    %c0_i32_1 = arith.constant 0 : i32
    return %c0_i32, %c0_i32_0 : i32, i32
  }
  func.func @transform_5(%arg0: i32, %arg1: i32) -> (i32, i32) {
    %c0_i32 = arith.constant 0 : i32
    %c0_i32_0 = arith.constant 0 : i32
    %c0_i32_1 = arith.constant 0 : i32
    return %c0_i32, %c0_i32_0 : i32, i32
  }
  func.func @transform_6(%arg0: i32, %arg1: i32) -> (i32, i32) {
    %c0_i32 = arith.constant 0 : i32
    %c0_i32_0 = arith.constant 0 : i32
    %c0_i32_1 = arith.constant 0 : i32
    return %c0_i32, %c0_i32_0 : i32, i32
  }
  func.func @transform_7(%arg0: i32, %arg1: i32) -> (i32, i32) {
    %c0_i32 = arith.constant 0 : i32
    %c0_i32_0 = arith.constant 0 : i32
    %c0_i32_1 = arith.constant 0 : i32
    return %c0_i32, %c0_i32_0 : i32, i32
  }
  func.func @transform_8(%arg0: i32, %arg1: i32) -> (i32, i32) {
    %c0_i32 = arith.constant 0 : i32
    %c0_i32_0 = arith.constant 0 : i32
    %c0_i32_1 = arith.constant 0 : i32
    return %c0_i32, %c0_i32_0 : i32, i32
  }
  func.func @transform_9(%arg0: i32, %arg1: i32) -> (i32, i32) {
    %0 = arith.muli %arg1, %arg0 : i32
    %c0_i32 = arith.constant 0 : i32
    %c0_i32_0 = arith.constant 0 : i32
    return %c0_i32, %0 : i32, i32
  }
  func.func @transform_10(%arg0: i32, %arg1: i32) -> (i32, i32) {
    %c0_i32 = arith.constant 0 : i32
    %c0_i32_0 = arith.constant 0 : i32
    %c0_i32_1 = arith.constant 0 : i32
    return %c0_i32, %c0_i32_0 : i32, i32
  }
  func.func @transform_11(%arg0: i32, %arg1: i32) -> (i32, i32) {
    %c0_i32 = arith.constant 0 : i32
    %c0_i32_0 = arith.constant 0 : i32
    %c0_i32_1 = arith.constant 0 : i32
    return %c0_i32, %c0_i32_0 : i32, i32
  }
}

</mosaic_0001>

<llo_original>
// kernel: bclassifier_forward.1
$region0: #{bclassifier_forward.1}
  #allocation0 [shape = 'u32[]', space=smem, size = 0x4, offset = 0x4, fixed_abs, tag = 'smem constant byte address 0x4 - core index']
  #allocation1 [shape = 'u32[72,128]{1,0:T(1,128)}', space=vmem, size = 0x9000, scoped, tag = 'internal scratch']
  #allocation2 [shape = 'f32[1,2]{1,0:T(1,128)}', space=vmem, size = 0x200, scoped, tag = 'scratch operand']
  #allocation3 [shape = 'f32[2,128]{1,0:T(2,128)}', space=vmem, size = 0x400, scoped, tag = 'scratch operand']
  #allocation4 [shape = 'f32[2,1]{1,0:T(2,128)}', space=vmem, size = 0x400, scoped, tag = 'scratch operand']
  #allocation5 [shape = 'f32[2,128]{1,0:T(2,128)}', space=vmem, size = 0x400, scoped, tag = 'scratch operand']
  %s0 = inlined_call_operand.vmem [shape: f32[384,2], index: 0, kind: input, shape index: {}]
  %s1 = inlined_call_operand.vmem [shape: bf16[384,128], index: 1, kind: input, shape index: {}]
  %s2 = inlined_call_operand.vmem [shape: bf16[128,128], index: 2, kind: input, shape index: {}]
  %s3 = inlined_call_operand.vmem [shape: f32[1,128], index: 3, kind: input, shape index: {}]
  %s4 = inlined_call_operand.vmem [shape: bf16[128,128], index: 4, kind: input, shape index: {}]
  %s5 = inlined_call_operand.vmem [shape: f32[1,128], index: 5, kind: input, shape index: {}]
  %s6 = inlined_call_operand.vmem [shape: bf16[256,2], index: 6, kind: input, shape index: {}]
  %s7 = inlined_call_operand.vmem [shape: f32[1,2], index: 7, kind: input, shape index: {}]
  %s8 = inlined_call_operand.hbm [shape: f32[1,2], index: 8, kind: output, shape index: {0}]
  %s9 = inlined_call_operand.vmem [shape: f32[2,384], index: 9, kind: output, shape index: {1}]
  %s10 = inlined_call_operand.hbm [shape: f32[2,128], index: 10, kind: output, shape index: {2}]
  %s11 = inlined_call_operand.vmem [shape: f32[2,1], index: 11, kind: output, shape index: {3}]
  %12 = xla_tuple %s8, %s9, %s10, %s11
  %s13 = sld [smem:[#allocation0]]
  $region105: #{bclassifier_forward.1} parent=0
    _
  %s15 = ssub.s32 1, %s13
  %s16 = scalar_select 0, %s15, %s13
  $region1: #{bclassifier_forward.1} parent=0
    #allocation6 [shape = 'u8[512]{0}', space=vmem, size = 0x400, scoped, tag = 'output window, operand 0, single buffered']
    #allocation7 [shape = 's32[2]{0}', space=sflag, size = 0x8, scoped, tag = 'scoped memory for bclassifier_forward.1']
    #allocation8 [shape = 'u8[1024]{0}', space=vmem, size = 0x400, scoped, tag = 'output window, operand 2, single buffered']
    #allocation9 [shape = 's32[1]{0}', space=sflag, size = 0x4, scoped, tag = 'scoped memory for bclassifier_forward.1']
    %17 = vsyncpa [#allocation7], 0
    %18 = vsyncpa [#allocation9], 0
    loop: start=0, step=1, limit=8
    $region2: #{bclassifier_forward.1} parent=1 // loop_pre_header
      _
    $region3: #{bclassifier_forward.1} parent=1 // loop_header
      %s20 = sphi 0, %s24
      %p21 = scmp.ge.s32.totalorder %s20, 8
      %s27 = sphi 0, %s39
      %s28 = sphi 0, %s35
      %s29 = sphi 0, %s27
      %s30 = sphi 0, %s28
      %s31 = sphi 0, %s29
      %s32 = sphi 0, %s30
      %s46 = sphi 0, %s48
      %s49 = sphi 0, %s46
      %s50 = sphi 0, %s49
      %s66 = sphi 0, %s50
      %s72 = sphi 0, %s74
      %s75 = sphi 0, %s72
      %s76 = sphi 0, %s75
      %s92 = sphi 0, %s76
      %s96 = sphi 0, %s96
      %s98 = sphi 0, %s96
      %s99 = sphi 0, %s98
      %s113 = sphi 0, %s99
      %s117 = sphi 0, %s117
      %s119 = sphi 0, %s117
      %s120 = sphi 0, %s119
      %s134 = sphi 0, %s120
      %s138 = sphi 0, %s138
      %s140 = sphi 0, %s138
      %s141 = sphi 0, %s140
      %s155 = sphi 0, %s141
      %s159 = sphi 0, %s159
      %s161 = sphi 0, %s159
      %s162 = sphi 0, %s161
      %s176 = sphi 0, %s162
      %s180 = sphi 0, %s180
      %s182 = sphi 0, %s180
      %s183 = sphi 0, %s182
      %s197 = sphi 0, %s183
      %s201 = sphi 0, %s201
      %s203 = sphi 0, %s201
      %s204 = sphi 0, %s203
      %s218 = sphi 0, %s204
      %s222 = sphi 0, %s222
      %s224 = sphi 0, %s222
      %s225 = sphi 0, %s224
      %s239 = sphi 0, %s225
      %s247 = sphi 0, %s249
      %s250 = sphi 0, %s247
      %s251 = sphi 0, %s250
      %s267 = sphi 0, %s251
      %s271 = sphi 0, %s271
      %s273 = sphi 0, %s271
      %s274 = sphi 0, %s273
      %s288 = sphi 0, %s274
      %s292 = sphi 0, %s292
      %s294 = sphi 0, %s292
      %s295 = sphi 0, %s294
      %s309 = sphi 0, %s295
    $region4: #{bclassifier_forward.1} parent=1 // loop_header_branch
      %23 = sbr.rel (%p21) target = $region8
    $region5: #{bclassifier_forward.1} parent=1 // loop_body
      %s25 = ssub.s32 %s20, 1
      %s26 = ssub.s32 %s20, 2
      %s33 = sadd.s32 1, %s28
      %p34 = scmp.ge.s32.totalorder %s33, 3
      %s35 = scalar_select %p34, 0, %s33
      %s36 = sadd.s32 1, %s27
      %s37 = scalar_select %p34, %s36, %s27
      %p38 = scmp.ge.s32.totalorder %s37, 2
      %s39 = scalar_select %p38, 0, %s37
      %s40 = ssub.s32 1, %s27
      %s41 = smul.u32 %s28, %s40
      %s42 = ssub.s32 1, %s39
      %s43 = smul.u32 %s35, %s42
      %s44 = ssub.s32 %s41, %s43
      %p45 = scmp.eq.s32.totalorder %s44, 0
      %s47 = sadd.s32 %s46, 1
      %s48 = scalar_select %p45, %s46, %s47
      %p51 = pneg %p45
      %p52 = scmp.eq.s32.totalorder %s20, 5
      %p53 = por %p51, %p52
      %p54 = scmp.ne.s32.totalorder %s46, %s49
      %p55 = scmp.eq.s32.totalorder %s20, 0
      %p56 = por %p54, %p55
      %p57 = scmp.ne.s32.totalorder %s46, %s49
      %p58 = scmp.eq.s32.totalorder %s25, 5
      %p59 = por %p57, %p58
      %p60 = scmp.ne.s32.totalorder %s49, %s50
      %p61 = scmp.eq.s32.totalorder %s25, 0
      %p62 = por %p60, %p61
      %p63 = scmp.ne.s32.totalorder %s49, %s50
      %p64 = scmp.eq.s32.totalorder %s26, 5
      %p65 = por %p63, %p64
      %p67 = scmp.ne.s32.totalorder %s50, %s66
      %p68 = scmp.eq.s32.totalorder %s26, 0
      %p69 = por %p67, %p68
      %s70 = ssub.s32 %s28, %s35
      %p71 = scmp.eq.s32.totalorder %s70, 0
      %s73 = sadd.s32 %s72, 1
      %s74 = scalar_select %p71, %s72, %s73
      %p77 = pneg %p71
      %p78 = scmp.eq.s32.totalorder %s20, 5
      %p79 = por %p77, %p78
      %p80 = scmp.ne.s32.totalorder %s72, %s75
      %p81 = scmp.eq.s32.totalorder %s20, 0
      %p82 = por %p80, %p81
      %p83 = scmp.ne.s32.totalorder %s72, %s75
      %p84 = scmp.eq.s32.totalorder %s25, 5
      %p85 = por %p83, %p84
      %p86 = scmp.ne.s32.totalorder %s75, %s76
      %p87 = scmp.eq.s32.totalorder %s25, 0
      %p88 = por %p86, %p87
      %p89 = scmp.ne.s32.totalorder %s75, %s76
      %p90 = scmp.eq.s32.totalorder %s26, 5
      %p91 = por %p89, %p90
      %p93 = scmp.ne.s32.totalorder %s76, %s92
      %p94 = scmp.eq.s32.totalorder %s26, 0
      %p95 = por %p93, %p94
      %s97 = sadd.s32 %s96, 1
      %p100 = scmp.eq.s32.totalorder %s20, 5
      %p101 = scmp.ne.s32.totalorder %s96, %s98
      %p102 = scmp.eq.s32.totalorder %s20, 0
      %p103 = por %p101, %p102
      %p104 = scmp.ne.s32.totalorder %s96, %s98
      %p105 = scmp.eq.s32.totalorder %s25, 5
      %p106 = por %p104, %p105
      %p107 = scmp.ne.s32.totalorder %s98, %s99
      %p108 = scmp.eq.s32.totalorder %s25, 0
      %p109 = por %p107, %p108
      %p110 = scmp.ne.s32.totalorder %s98, %s99
      %p111 = scmp.eq.s32.totalorder %s26, 5
      %p112 = por %p110, %p111
      %p114 = scmp.ne.s32.totalorder %s99, %s113
      %p115 = scmp.eq.s32.totalorder %s26, 0
      %p116 = por %p114, %p115
      %s118 = sadd.s32 %s117, 1
      %p121 = scmp.eq.s32.totalorder %s20, 5
      %p122 = scmp.ne.s32.totalorder %s117, %s119
      %p123 = scmp.eq.s32.totalorder %s20, 0
      %p124 = por %p122, %p123
      %p125 = scmp.ne.s32.totalorder %s117, %s119
      %p126 = scmp.eq.s32.totalorder %s25, 5
      %p127 = por %p125, %p126
      %p128 = scmp.ne.s32.totalorder %s119, %s120
      %p129 = scmp.eq.s32.totalorder %s25, 0
      %p130 = por %p128, %p129
      %p131 = scmp.ne.s32.totalorder %s119, %s120
      %p132 = scmp.eq.s32.totalorder %s26, 5
      %p133 = por %p131, %p132
      %p135 = scmp.ne.s32.totalorder %s120, %s134
      %p136 = scmp.eq.s32.totalorder %s26, 0
      %p137 = por %p135, %p136
      %s139 = sadd.s32 %s138, 1
      %p142 = scmp.eq.s32.totalorder %s20, 5
      %p143 = scmp.ne.s32.totalorder %s138, %s140
      %p144 = scmp.eq.s32.totalorder %s20, 0
      %p145 = por %p143, %p144
      %p146 = scmp.ne.s32.totalorder %s138, %s140
      %p147 = scmp.eq.s32.totalorder %s25, 5
      %p148 = por %p146, %p147
      %p149 = scmp.ne.s32.totalorder %s140, %s141
      %p150 = scmp.eq.s32.totalorder %s25, 0
      %p151 = por %p149, %p150
      %p152 = scmp.ne.s32.totalorder %s140, %s141
      %p153 = scmp.eq.s32.totalorder %s26, 5
      %p154 = por %p152, %p153
      %p156 = scmp.ne.s32.totalorder %s141, %s155
      %p157 = scmp.eq.s32.totalorder %s26, 0
      %p158 = por %p156, %p157
      %s160 = sadd.s32 %s159, 1
      %p163 = scmp.eq.s32.totalorder %s20, 5
      %p164 = scmp.ne.s32.totalorder %s159, %s161
      %p165 = scmp.eq.s32.totalorder %s20, 0
      %p166 = por %p164, %p165
      %p167 = scmp.ne.s32.totalorder %s159, %s161
      %p168 = scmp.eq.s32.totalorder %s25, 5
      %p169 = por %p167, %p168
      %p170 = scmp.ne.s32.totalorder %s161, %s162
      %p171 = scmp.eq.s32.totalorder %s25, 0
      %p172 = por %p170, %p171
      %p173 = scmp.ne.s32.totalorder %s161, %s162
      %p174 = scmp.eq.s32.totalorder %s26, 5
      %p175 = por %p173, %p174
      %p177 = scmp.ne.s32.totalorder %s162, %s176
      %p178 = scmp.eq.s32.totalorder %s26, 0
      %p179 = por %p177, %p178
      %s181 = sadd.s32 %s180, 1
      %p184 = scmp.eq.s32.totalorder %s20, 5
      %p185 = scmp.ne.s32.totalorder %s180, %s182
      %p186 = scmp.eq.s32.totalorder %s20, 0
      %p187 = por %p185, %p186
      %p188 = scmp.ne.s32.totalorder %s180, %s182
      %p189 = scmp.eq.s32.totalorder %s25, 5
      %p190 = por %p188, %p189
      %p191 = scmp.ne.s32.totalorder %s182, %s183
      %p192 = scmp.eq.s32.totalorder %s25, 0
      %p193 = por %p191, %p192
      %p194 = scmp.ne.s32.totalorder %s182, %s183
      %p195 = scmp.eq.s32.totalorder %s26, 5
      %p196 = por %p194, %p195
      %p198 = scmp.ne.s32.totalorder %s183, %s197
      %p199 = scmp.eq.s32.totalorder %s26, 0
      %p200 = por %p198, %p199
      %s202 = sadd.s32 %s201, 1
      %p205 = scmp.eq.s32.totalorder %s20, 5
      %p206 = scmp.ne.s32.totalorder %s201, %s203
      %p207 = scmp.eq.s32.totalorder %s20, 0
      %p208 = por %p206, %p207
      %p209 = scmp.ne.s32.totalorder %s201, %s203
      %p210 = scmp.eq.s32.totalorder %s25, 5
      %p211 = por %p209, %p210
      %p212 = scmp.ne.s32.totalorder %s203, %s204
      %p213 = scmp.eq.s32.totalorder %s25, 0
      %p214 = por %p212, %p213
      %p215 = scmp.ne.s32.totalorder %s203, %s204
      %p216 = scmp.eq.s32.totalorder %s26, 5
      %p217 = por %p215, %p216
      %p219 = scmp.ne.s32.totalorder %s204, %s218
      %p220 = scmp.eq.s32.totalorder %s26, 0
      %p221 = por %p219, %p220
      %s223 = sadd.s32 %s222, 1
      %p226 = scmp.eq.s32.totalorder %s20, 5
      %p227 = scmp.ne.s32.totalorder %s222, %s224
      %p228 = scmp.eq.s32.totalorder %s20, 0
      %p229 = por %p227, %p228
      %p230 = scmp.ne.s32.totalorder %s222, %s224
      %p231 = scmp.eq.s32.totalorder %s25, 5
      %p232 = por %p230, %p231
      %p233 = scmp.ne.s32.totalorder %s224, %s225
      %p234 = scmp.eq.s32.totalorder %s25, 0
      %p235 = por %p233, %p234
      %p236 = scmp.ne.s32.totalorder %s224, %s225
      %p237 = scmp.eq.s32.totalorder %s26, 5
      %p238 = por %p236, %p237
      %p240 = scmp.ne.s32.totalorder %s225, %s239
      %p241 = scmp.eq.s32.totalorder %s26, 0
      %p242 = por %p240, %p241
      %s243 = smul.u32 %s28, %s27
      %s244 = smul.u32 %s35, %s39
      %s245 = ssub.s32 %s243, %s244
      %p246 = scmp.eq.s32.totalorder %s245, 0
      %s248 = sadd.s32 %s247, 1
      %s249 = scalar_select %p246, %s247, %s248
      %p252 = pneg %p246
      %p253 = scmp.eq.s32.totalorder %s20, 5
      %p254 = por %p252, %p253
      %p255 = scmp.ne.s32.totalorder %s247, %s250
      %p256 = scmp.eq.s32.totalorder %s20, 0
      %p257 = por %p255, %p256
      %p258 = scmp.ne.s32.totalorder %s247, %s250
      %p259 = scmp.eq.s32.totalorder %s25, 5
      %p260 = por %p258, %p259
      %p261 = scmp.ne.s32.totalorder %s250, %s251
      %p262 = scmp.eq.s32.totalorder %s25, 0
      %p263 = por %p261, %p262
      %p264 = scmp.ne.s32.totalorder %s250, %s251
      %p265 = scmp.eq.s32.totalorder %s26, 5
      %p266 = por %p264, %p265
      %p268 = scmp.ne.s32.totalorder %s251, %s267
      %p269 = scmp.eq.s32.totalorder %s26, 0
      %p270 = por %p268, %p269
      %s272 = sadd.s32 %s271, 1
      %p275 = scmp.eq.s32.totalorder %s20, 5
      %p276 = scmp.ne.s32.totalorder %s271, %s273
      %p277 = scmp.eq.s32.totalorder %s20, 0
      %p278 = por %p276, %p277
      %p279 = scmp.ne.s32.totalorder %s271, %s273
      %p280 = scmp.eq.s32.totalorder %s25, 5
      %p281 = por %p279, %p280
      %p282 = scmp.ne.s32.totalorder %s273, %s274
      %p283 = scmp.eq.s32.totalorder %s25, 0
      %p284 = por %p282, %p283
      %p285 = scmp.ne.s32.totalorder %s273, %s274
      %p286 = scmp.eq.s32.totalorder %s26, 5
      %p287 = por %p285, %p286
      %p289 = scmp.ne.s32.totalorder %s274, %s288
      %p290 = scmp.eq.s32.totalorder %s26, 0
      %p291 = por %p289, %p290
      %s293 = sadd.s32 %s292, 1
      %p296 = scmp.eq.s32.totalorder %s20, 5
      %p297 = scmp.ne.s32.totalorder %s292, %s294
      %p298 = scmp.eq.s32.totalorder %s20, 0
      %p299 = por %p297, %p298
      %p300 = scmp.ne.s32.totalorder %s292, %s294
      %p301 = scmp.eq.s32.totalorder %s25, 5
      %p302 = por %p300, %p301
      %p303 = scmp.ne.s32.totalorder %s294, %s295
      %p304 = scmp.eq.s32.totalorder %s25, 0
      %p305 = por %p303, %p304
      %p306 = scmp.ne.s32.totalorder %s294, %s295
      %p307 = scmp.eq.s32.totalorder %s26, 5
      %p308 = por %p306, %p307
      %p310 = scmp.ne.s32.totalorder %s295, %s309
      %p311 = scmp.eq.s32.totalorder %s26, 0
      %p312 = por %p310, %p311
      %p313 = scmp.le.s32.totalorder 1, %s20
      %p314 = scmp.lt.s32.totalorder %s20, 7
      %p315 = pnand %p313, %p314
      %p316 = pneg %p315
      // Predicated region
      $region9: #{bclassifier_forward.1} parent=5 // pred_check
        _
      $region10: #{bclassifier_forward.1} parent=5 // pred_check_branch
        %318 = sbr.rel (%p315) target = $region12
      $region11: #{bclassifier_forward.1} parent=5 // pred_region
        %s319 = ssub.s32 %s20, 1
        // Predicated region
        $region13: #{bclassifier_forward.1} parent=11 // pred_check
          %p320 = pneg %p109
        $region14: #{bclassifier_forward.1} parent=11 // pred_check_branch
          %322 = sbr.rel (%p320) target = $region16
        $region15: #{bclassifier_forward.1} parent=11 // pred_region
          _
        $region16: #{bclassifier_forward.1} parent=11 // pred_fallthru
          _
        // Predicated region
        $region17: #{bclassifier_forward.1} parent=11 // pred_check
          %p323 = pneg %p130
        $region18: #{bclassifier_forward.1} parent=11 // pred_check_branch
          %325 = sbr.rel (%p323) target = $region20
        $region19: #{bclassifier_forward.1} parent=11 // pred_region
          _
        $region20: #{bclassifier_forward.1} parent=11 // pred_fallthru
          _
        // Predicated region
        $region21: #{bclassifier_forward.1} parent=11 // pred_check
          %p326 = pneg %p151
        $region22: #{bclassifier_forward.1} parent=11 // pred_check_branch
          %328 = sbr.rel (%p326) target = $region24
        $region23: #{bclassifier_forward.1} parent=11 // pred_region
          _
        $region24: #{bclassifier_forward.1} parent=11 // pred_fallthru
          _
        // Predicated region
        $region25: #{bclassifier_forward.1} parent=11 // pred_check
          %p329 = pneg %p172
        $region26: #{bclassifier_forward.1} parent=11 // pred_check_branch
          %331 = sbr.rel (%p329) target = $region28
        $region27: #{bclassifier_forward.1} parent=11 // pred_region
          _
        $region28: #{bclassifier_forward.1} parent=11 // pred_fallthru
          _
        // Predicated region
        $region29: #{bclassifier_forward.1} parent=11 // pred_check
          %p332 = pneg %p193
        $region30: #{bclassifier_forward.1} parent=11 // pred_check_branch
          %334 = sbr.rel (%p332) target = $region32
        $region31: #{bclassifier_forward.1} parent=11 // pred_region
          _
        $region32: #{bclassifier_forward.1} parent=11 // pred_fallthru
          _
        // Predicated region
        $region33: #{bclassifier_forward.1} parent=11 // pred_check
          %p335 = pneg %p214
        $region34: #{bclassifier_forward.1} parent=11 // pred_check_branch
          %337 = sbr.rel (%p335) target = $region36
        $region35: #{bclassifier_forward.1} parent=11 // pred_region
          _
        $region36: #{bclassifier_forward.1} parent=11 // pred_fallthru
          _
      $region12: #{bclassifier_forward.1} parent=5 // pred_fallthru
        _
      %p338 = scmp.lt.s32.totalorder %s20, 6
      // Predicated region
      $region37: #{bclassifier_forward.1} parent=5 // pred_check
        %p339 = pneg %p338
      $region38: #{bclassifier_forward.1} parent=5 // pred_check_branch
        %341 = sbr.rel (%p339) target = $region40
      $region39: #{bclassifier_forward.1} parent=5 // pred_region
        // Predicated region
        $region41: #{bclassifier_forward.1} parent=39 // pred_check
          %p342 = pneg %p56
        $region42: #{bclassifier_forward.1} parent=39 // pred_check_branch
          %344 = sbr.rel (%p342) target = $region44
        $region43: #{bclassifier_forward.1} parent=39 // pred_region
          %s345 = ssub.s32 1, %s27
          %s346 = smul.u32 %s28, %s345
          %s347 = smul.u32 16, %s346
          %p348 = scmp.lt.s32.totalorder %s347, 47
          %s349 = scalar_select %p348, %s347, 47
          %s350 = smul.addr %s349, 8
          %s351 = scalar_lea.vmem %s0, %s350
          %s352 = ssub.s32 1, %s27
          %s353 = smul.u32 %s28, %s352
          %s354 = smul.u32 16, %s353
        $region44: #{bclassifier_forward.1} parent=39 // pred_fallthru
          _
        // Predicated region
        $region45: #{bclassifier_forward.1} parent=39 // pred_check
          %p355 = pneg %p82
        $region46: #{bclassifier_forward.1} parent=39 // pred_check_branch
          %357 = sbr.rel (%p355) target = $region48
        $region47: #{bclassifier_forward.1} parent=39 // pred_region
          %s358 = smul.u32 16, %s28
          %p359 = scmp.lt.s32.totalorder %s358, 47
          %s360 = scalar_select %p359, %s358, 47
          %s361 = smul.addr %s360, 4
          %s362 = scalar_lea.vmem %s1, %s361
          %s363 = smul.u32 16, %s28
        $region48: #{bclassifier_forward.1} parent=39 // pred_fallthru
          _
      $region40: #{bclassifier_forward.1} parent=5 // pred_fallthru
        _
      %p364 = scmp.le.s32.totalorder 1, %s20
      %p365 = scmp.lt.s32.totalorder %s20, 7
      %p366 = pnand %p364, %p365
      %p367 = pneg %p366
      // Predicated region
      $region49: #{bclassifier_forward.1} parent=5 // pred_check
        _
      $region50: #{bclassifier_forward.1} parent=5 // pred_check_branch
        %369 = sbr.rel (%p366) target = $region52
      $region51: #{bclassifier_forward.1} parent=5 // pred_region
        %s370 = ssub.s32 %s20, 1
        %s371 = ssub.s32 1, %s29
        %s372 = smul.u32 %s30, %s371
        %s373 = smul.u32 16, %s372
        %p374 = scmp.lt.s32.totalorder %s373, 47
        %s375 = scalar_select %p374, %s373, 47
        %s376 = smul.addr %s375, 8
        %s377 = scalar_lea.vmem %s0, %s376
        %p378 = pneg %p62
        %p379 = pneg %p59
        %s380 = smul.u32 16, %s30
        %p381 = scmp.lt.s32.totalorder %s380, 47
        %s382 = scalar_select %p381, %s380, 47
        %s383 = smul.addr %s382, 4
        %s384 = scalar_lea.vmem %s1, %s383
        %p385 = pneg %p88
        %p386 = pneg %p85
        %p387 = pneg %p109
        %p388 = pneg %p106
        %p389 = pneg %p130
        %p390 = pneg %p127
        %p391 = pneg %p151
        %p392 = pneg %p148
        %p393 = pneg %p172
        %p394 = pneg %p169
        %p395 = pneg %p193
        %p396 = pneg %p190
        %p397 = pneg %p214
        %p398 = pneg %p211
        %p399 = pneg %p235
        %p400 = pneg %p232
        %p401 = pneg %p263
        %p402 = pneg %p260
        %s403 = smul.u32 %s30, %s29
        %p404 = scmp.lt.s32.totalorder %s403, 2
        %s405 = scalar_select %p404, %s403, 2
        %s406 = smul.addr %s405, 2
        %s407 = scalar_lea.vmem %s9, %s406
        %p408 = pneg %p284
        %p409 = pneg %p281
        %p410 = pneg %p305
        %p411 = pneg %p302
        %s412 = ssub.s32 1, %s29
        %s413 = smul.u32 %s30, %s412
        %s414 = smul.u32 16, %s413
        %p415 = scmp.lt.s32.totalorder %s414, 47
        %s416 = scalar_select %p415, %s414, 47
        %s417 = smul.addr %s416, 8
        %s418 = scalar_lea.vmem %s0, %s417
        %s419 = ssub.s32 1, %s29
        %s420 = smul.u32 %s30, %s419
        %s421 = smul.u32 16, %s420
        %s422 = smul.u32 16, %s30
        %p423 = scmp.lt.s32.totalorder %s422, 47
        %s424 = scalar_select %p423, %s422, 47
        %s425 = smul.addr %s424, 4
        %s426 = scalar_lea.vmem %s1, %s425
        %s427 = smul.u32 16, %s30
        %s428 = smul.u32 %s30, %s29
        %p429 = scmp.lt.s32.totalorder %s428, 2
        %s430 = scalar_select %p429, %s428, 2
        %s431 = smul.addr %s430, 2
        %s432 = scalar_lea.vmem %s9, %s431
        %s433 = smul.u32 %s30, %s29
        %p436 = scmp.eq.s32.totalorder %s29, 0
        %p437 = scmp.eq.s32.totalorder %s30, 0
        %p438 = pnand %p436, %p437
        %p439 = pneg %p438
        // Predicated region
        $region53: #{bclassifier_forward.1} parent=51 // pred_check
          _
        $region54: #{bclassifier_forward.1} parent=51 // pred_check_branch
          %441 = sbr.rel (%p438) target = $region56
        $region55: #{bclassifier_forward.1} parent=51 // pred_region
          %vm442 = vcmask 8192
          %443 = vst.msk [vmem:[#allocation2] sm:$0x1] %vm442, -inf
          %444 = vst [vmem:[#allocation3] sm:$0x3] 0.0
          %vm445 = vcmask 1024
          %446 = vst.msk [vmem:[#allocation4] sm:$0x3] %vm445, 0.0
          %447 = vst [vmem:[#allocation5] sm:$0x3] 0.0
        $region56: #{bclassifier_forward.1} parent=51 // pred_fallthru
          _
        %v448 = vld [vmem:[%s426] sm:$0xf]
        %v449 = vld [vmem:[%s426 + $0x4] sm:$0xf]
        %v450 = vld [vmem:[%s426 + $0x8] sm:$0xf]
        %v451 = vld [vmem:[%s426 + $0xc] sm:$0xf]
        %v452 = vld [vmem:[%s426 + $0x10] sm:$0xf]
        %v453 = vld [vmem:[%s426 + $0x14] sm:$0xf]
        %v454 = vld [vmem:[%s426 + $0x18] sm:$0xf]
        %v455 = vld [vmem:[%s426 + $0x1c] sm:$0xf]
        %v456 = vld [vmem:[%s426 + $0x20] sm:$0xf]
        %v457 = vld [vmem:[%s426 + $0x24] sm:$0xf]
        %v458 = vld [vmem:[%s426 + $0x28] sm:$0xf]
        %v459 = vld [vmem:[%s426 + $0x2c] sm:$0xf]
        %v460 = vld [vmem:[%s426 + $0x30] sm:$0xf]
        %v461 = vld [vmem:[%s426 + $0x34] sm:$0xf]
        %v462 = vld [vmem:[%s426 + $0x38] sm:$0xf]
        %v463 = vld [vmem:[%s426 + $0x3c] sm:$0xf]
        %v464 = vld [vmem:[%s2] sm:$0xf]
        %v465 = vld [vmem:[%s2 + $0x4] sm:$0xf]
        %v466 = vld [vmem:[%s2 + $0x8] sm:$0xf]
        %v467 = vld [vmem:[%s2 + $0xc] sm:$0xf]
        %v468 = vld [vmem:[%s2 + $0x10] sm:$0xf]
        %v469 = vld [vmem:[%s2 + $0x14] sm:$0xf]
        %v470 = vld [vmem:[%s2 + $0x18] sm:$0xf]
        %v471 = vld [vmem:[%s2 + $0x1c] sm:$0xf]
        %v472 = vld [vmem:[%s2 + $0x20] sm:$0xf]
        %v473 = vld [vmem:[%s2 + $0x24] sm:$0xf]
        %v474 = vld [vmem:[%s2 + $0x28] sm:$0xf]
        %v475 = vld [vmem:[%s2 + $0x2c] sm:$0xf]
        %v476 = vld [vmem:[%s2 + $0x30] sm:$0xf]
        %v477 = vld [vmem:[%s2 + $0x34] sm:$0xf]
        %v478 = vld [vmem:[%s2 + $0x38] sm:$0xf]
        %v479 = vld [vmem:[%s2 + $0x3c] sm:$0xf]
        %v480 = vld [vmem:[%s3] sm:$0x1]
        %v482 = vperm.slane %v480, 0
        %v500 = vunpack.c.l.b16 %v448
        %v501 = vunpack.c.l.b16 %v449
        %v502 = vunpack.c.l.b16 %v450
        %v503 = vunpack.c.l.b16 %v451
        %v504 = vunpack.c.l.b16 %v452
        %v505 = vunpack.c.l.b16 %v453
        %v506 = vunpack.c.l.b16 %v454
        %v507 = vunpack.c.l.b16 %v455
        %v508 = vunpack.c.l.b16 %v456
        %v509 = vunpack.c.l.b16 %v457
        %v510 = vunpack.c.l.b16 %v458
        %v511 = vunpack.c.l.b16 %v459
        %v512 = vunpack.c.l.b16 %v460
        %v513 = vunpack.c.l.b16 %v461
        %v514 = vunpack.c.l.b16 %v462
        %v515 = vunpack.c.l.b16 %v463
        %v516 = vpack.c.b16 %v501, %v500
        %v517 = vpack.c.b16 %v503, %v502
        %v518 = vpack.c.b16 %v505, %v504
        %v519 = vpack.c.b16 %v507, %v506
        %v520 = vpack.c.b16 %v509, %v508
        %v521 = vpack.c.b16 %v511, %v510
        %v522 = vpack.c.b16 %v513, %v512
        %v523 = vpack.c.b16 %v515, %v514
        %v548 = vunpack.c.l.b16 %v464
        %v549 = vunpack.c.l.b16 %v465
        %v550 = vunpack.c.l.b16 %v466
        %v551 = vunpack.c.l.b16 %v467
        %v552 = vunpack.c.l.b16 %v468
        %v553 = vunpack.c.l.b16 %v469
        %v554 = vunpack.c.l.b16 %v470
        %v555 = vunpack.c.l.b16 %v471
        %v556 = vunpack.c.l.b16 %v472
        %v557 = vunpack.c.l.b16 %v473
        %v558 = vunpack.c.l.b16 %v474
        %v559 = vunpack.c.l.b16 %v475
        %v560 = vunpack.c.l.b16 %v476
        %v561 = vunpack.c.l.b16 %v477
        %v562 = vunpack.c.l.b16 %v478
        %v563 = vunpack.c.l.b16 %v479
        %v564 = vpack.c.b16 %v549, %v548
        %v565 = vpack.c.b16 %v551, %v550
        %v566 = vpack.c.b16 %v553, %v552
        %v567 = vpack.c.b16 %v555, %v554
        %v568 = vpack.c.b16 %v557, %v556
        %v569 = vpack.c.b16 %v559, %v558
        %v570 = vpack.c.b16 %v561, %v560
        %v571 = vpack.c.b16 %v563, %v562
        %580 = vmatpush.bf16.msra.mxu0 %v571
        %581 = vmatpush.bf16.msra.mxu0 %v570
        %582 = vmatpush.bf16.msra.mxu0 %v569
        %583 = vmatpush.bf16.msra.mxu0 %v568
        %584 = vmatpush.bf16.msra.mxu0 %v567
        %585 = vmatpush.bf16.msra.mxu0 %v566
        %586 = vmatpush.bf16.msra.mxu0 %v565
        %587 = vmatpush.bf16.msra.mxu0 %v564
        %588 = vmatmul.bf16.gmra.mxu0 %v516
        %v589 = vpop.f32.mrf.mxu0
        %v590 = vadd.f32 %v482, %v589
        %v591 = vpop.f32.mrf.mxu0
        %v592 = vadd.f32 %v482, %v591
        %593 = vmatmul.bf16.gmra.mxu0 %v517
        %v594 = vpop.f32.mrf.mxu0
        %v595 = vadd.f32 %v482, %v594
        %v596 = vpop.f32.mrf.mxu0
        %v597 = vadd.f32 %v482, %v596
        %598 = vmatmul.bf16.gmra.mxu0 %v518
        %v599 = vpop.f32.mrf.mxu0
        %v600 = vadd.f32 %v482, %v599
        %v601 = vpop.f32.mrf.mxu0
        %v602 = vadd.f32 %v482, %v601
        %603 = vmatmul.bf16.gmra.mxu0 %v519
        %v604 = vpop.f32.mrf.mxu0
        %v605 = vadd.f32 %v482, %v604
        %v606 = vpop.f32.mrf.mxu0
        %v607 = vadd.f32 %v482, %v606
        %608 = vmatmul.bf16.gmra.mxu0 %v520
        %v609 = vpop.f32.mrf.mxu0
        %v610 = vadd.f32 %v482, %v609
        %v611 = vpop.f32.mrf.mxu0
        %v612 = vadd.f32 %v482, %v611
        %613 = vmatmul.bf16.gmra.mxu0 %v521
        %v614 = vpop.f32.mrf.mxu0
        %v615 = vadd.f32 %v482, %v614
        %v616 = vpop.f32.mrf.mxu0
        %v617 = vadd.f32 %v482, %v616
        %618 = vmatmul.bf16.gmra.mxu0 %v522
        %v619 = vpop.f32.mrf.mxu0
        %v620 = vadd.f32 %v482, %v619
        %v621 = vpop.f32.mrf.mxu0
        %v622 = vadd.f32 %v482, %v621
        %623 = vmatmul.bf16.gmra.mxu0 %v523
        %v624 = vpop.f32.mrf.mxu0
        %v625 = vadd.f32 %v482, %v624
        %v626 = vpop.f32.mrf.mxu0
        %v627 = vadd.f32 %v482, %v626
        %628 = vdwg.mxu0
        %v629 = vmax.f32 %v590, 0.0
        %v630 = vmax.f32 %v592, 0.0
        %v631 = vmax.f32 %v595, 0.0
        %v632 = vmax.f32 %v597, 0.0
        %v633 = vmax.f32 %v600, 0.0
        %v634 = vmax.f32 %v602, 0.0
        %v635 = vmax.f32 %v605, 0.0
        %v636 = vmax.f32 %v607, 0.0
        %v637 = vmax.f32 %v610, 0.0
        %v638 = vmax.f32 %v612, 0.0
        %v639 = vmax.f32 %v615, 0.0
        %v640 = vmax.f32 %v617, 0.0
        %v641 = vmax.f32 %v620, 0.0
        %v642 = vmax.f32 %v622, 0.0
        %v643 = vmax.f32 %v625, 0.0
        %v644 = vmax.f32 %v627, 0.0
        %v645 = vpack.c.bf16 %v630, %v629
        %v646 = vpack.c.bf16 %v632, %v631
        %v647 = vpack.c.bf16 %v634, %v633
        %v648 = vpack.c.bf16 %v636, %v635
        %v649 = vpack.c.bf16 %v638, %v637
        %v650 = vpack.c.bf16 %v640, %v639
        %v651 = vpack.c.bf16 %v642, %v641
        %v652 = vpack.c.bf16 %v644, %v643
        %v653 = vld [vmem:[%s4] sm:$0xf]
        %v654 = vld [vmem:[%s4 + $0x4] sm:$0xf]
        %v655 = vld [vmem:[%s4 + $0x8] sm:$0xf]
        %v656 = vld [vmem:[%s4 + $0xc] sm:$0xf]
        %v657 = vld [vmem:[%s4 + $0x10] sm:$0xf]
        %v658 = vld [vmem:[%s4 + $0x14] sm:$0xf]
        %v659 = vld [vmem:[%s4 + $0x18] sm:$0xf]
        %v660 = vld [vmem:[%s4 + $0x1c] sm:$0xf]
        %v661 = vld [vmem:[%s4 + $0x20] sm:$0xf]
        %v662 = vld [vmem:[%s4 + $0x24] sm:$0xf]
        %v663 = vld [vmem:[%s4 + $0x28] sm:$0xf]
        %v664 = vld [vmem:[%s4 + $0x2c] sm:$0xf]
        %v665 = vld [vmem:[%s4 + $0x30] sm:$0xf]
        %v666 = vld [vmem:[%s4 + $0x34] sm:$0xf]
        %v667 = vld [vmem:[%s4 + $0x38] sm:$0xf]
        %v668 = vld [vmem:[%s4 + $0x3c] sm:$0xf]
        %v669 = vld [vmem:[%s5] sm:$0x1]
        %v671 = vperm.slane %v669, 0
        %v689 = vunpack.c.l.b16 %v653
        %v690 = vunpack.c.l.b16 %v654
        %v691 = vunpack.c.l.b16 %v655
        %v692 = vunpack.c.l.b16 %v656
        %v693 = vunpack.c.l.b16 %v657
        %v694 = vunpack.c.l.b16 %v658
        %v695 = vunpack.c.l.b16 %v659
        %v696 = vunpack.c.l.b16 %v660
        %v697 = vunpack.c.l.b16 %v661
        %v698 = vunpack.c.l.b16 %v662
        %v699 = vunpack.c.l.b16 %v663
        %v700 = vunpack.c.l.b16 %v664
        %v701 = vunpack.c.l.b16 %v665
        %v702 = vunpack.c.l.b16 %v666
        %v703 = vunpack.c.l.b16 %v667
        %v704 = vunpack.c.l.b16 %v668
        %v705 = vpack.c.b16 %v690, %v689
        %v706 = vpack.c.b16 %v692, %v691
        %v707 = vpack.c.b16 %v694, %v693
        %v708 = vpack.c.b16 %v696, %v695
        %v709 = vpack.c.b16 %v698, %v697
        %v710 = vpack.c.b16 %v700, %v699
        %v711 = vpack.c.b16 %v702, %v701
        %v712 = vpack.c.b16 %v704, %v703
        %721 = vmatpush.bf16.msra.mxu0 %v712
        %722 = vmatpush.bf16.msra.mxu0 %v711
        %723 = vmatpush.bf16.msra.mxu0 %v710
        %724 = vmatpush.bf16.msra.mxu0 %v709
        %725 = vmatpush.bf16.msra.mxu0 %v708
        %726 = vmatpush.bf16.msra.mxu0 %v707
        %727 = vmatpush.bf16.msra.mxu0 %v706
        %728 = vmatpush.bf16.msra.mxu0 %v705
        %729 = vmatmul.bf16.gmra.mxu0 %v645
        %v730 = vpop.f32.mrf.mxu0
        %v731 = vadd.f32 %v671, %v730
        %v732 = vpop.f32.mrf.mxu0
        %v733 = vadd.f32 %v671, %v732
        %734 = vmatmul.bf16.gmra.mxu0 %v646
        %v735 = vpop.f32.mrf.mxu0
        %v736 = vadd.f32 %v671, %v735
        %v737 = vpop.f32.mrf.mxu0
        %v738 = vadd.f32 %v671, %v737
        %739 = vmatmul.bf16.gmra.mxu0 %v647
        %v740 = vpop.f32.mrf.mxu0
        %v741 = vadd.f32 %v671, %v740
        %v742 = vpop.f32.mrf.mxu0
        %v743 = vadd.f32 %v671, %v742
        %744 = vmatmul.bf16.gmra.mxu0 %v648
        %v745 = vpop.f32.mrf.mxu0
        %v746 = vadd.f32 %v671, %v745
        %v747 = vpop.f32.mrf.mxu0
        %v748 = vadd.f32 %v671, %v747
        %749 = vmatmul.bf16.gmra.mxu0 %v649
        %v750 = vpop.f32.mrf.mxu0
        %v751 = vadd.f32 %v671, %v750
        %v752 = vpop.f32.mrf.mxu0
        %v753 = vadd.f32 %v671, %v752
        %754 = vmatmul.bf16.gmra.mxu0 %v650
        %v755 = vpop.f32.mrf.mxu0
        %v756 = vadd.f32 %v671, %v755
        %v757 = vpop.f32.mrf.mxu0
        %v758 = vadd.f32 %v671, %v757
        %759 = vmatmul.bf16.gmra.mxu0 %v651
        %v760 = vpop.f32.mrf.mxu0
        %v761 = vadd.f32 %v671, %v760
        %v762 = vpop.f32.mrf.mxu0
        %v763 = vadd.f32 %v671, %v762
        %764 = vmatmul.bf16.gmra.mxu0 %v652
        %v765 = vpop.f32.mrf.mxu0
        %v766 = vadd.f32 %v671, %v765
        %v767 = vpop.f32.mrf.mxu0
        %v768 = vadd.f32 %v671, %v767
        %769 = vdwg.mxu0
        %v770 = vpack.c.bf16 %v733, %v731
        %v771 = vpack.c.bf16 %v738, %v736
        %v772 = vpack.c.bf16 %v743, %v741
        %v773 = vpack.c.bf16 %v748, %v746
        %v774 = vpack.c.bf16 %v753, %v751
        %v775 = vpack.c.bf16 %v758, %v756
        %v776 = vpack.c.bf16 %v763, %v761
        %v777 = vpack.c.bf16 %v768, %v766
        %v778 = vunpack.c.l.bf16 %v770
        %v779 = vunpack.c.h.bf16 %v770
        %v780 = vunpack.c.l.bf16 %v771
        %v781 = vunpack.c.h.bf16 %v771
        %v782 = vunpack.c.l.bf16 %v772
        %v783 = vunpack.c.h.bf16 %v772
        %v784 = vunpack.c.l.bf16 %v773
        %v785 = vunpack.c.h.bf16 %v773
        %v786 = vunpack.c.l.bf16 %v774
        %v787 = vunpack.c.h.bf16 %v774
        %v788 = vunpack.c.l.bf16 %v775
        %v789 = vunpack.c.h.bf16 %v775
        %v790 = vunpack.c.l.bf16 %v776
        %v791 = vunpack.c.h.bf16 %v776
        %v792 = vunpack.c.l.bf16 %v777
        %v793 = vunpack.c.h.bf16 %v777
        %v794 = vtanh.pop %v778
        %v795 = vtanh.pop %v779
        %v796 = vtanh.pop %v780
        %v797 = vtanh.pop %v781
        %v798 = vtanh.pop %v782
        %v799 = vtanh.pop %v783
        %v800 = vtanh.pop %v784
        %v801 = vtanh.pop %v785
        %v802 = vtanh.pop %v786
        %v803 = vtanh.pop %v787
        %v804 = vtanh.pop %v788
        %v805 = vtanh.pop %v789
        %v806 = vtanh.pop %v790
        %v807 = vtanh.pop %v791
        %v808 = vtanh.pop %v792
        %v809 = vtanh.pop %v793
        %v810 = vpack.c.bf16 %v795, %v794
        %v811 = vpack.c.bf16 %v797, %v796
        %v812 = vpack.c.bf16 %v799, %v798
        %v813 = vpack.c.bf16 %v801, %v800
        %v814 = vpack.c.bf16 %v803, %v802
        %v815 = vpack.c.bf16 %v805, %v804
        %v816 = vpack.c.bf16 %v807, %v806
        %v817 = vpack.c.bf16 %v809, %v808
        // Predicated region
        $region57: #{bclassifier_forward.1} parent=51 // pred_check
          %p818 = pneg %p436
        $region58: #{bclassifier_forward.1} parent=51 // pred_check_branch
          %820 = sbr.rel (%p818) target = $region60
        $region59: #{bclassifier_forward.1} parent=51 // pred_region
          %v821 = vld [vmem:[%s418] sm:$0xff]
          %v822 = vld [vmem:[%s418 + $0x8] sm:$0xff]
          %v823 = vld [vmem:[%s418 + $0x10] sm:$0xff]
          %v824 = vld [vmem:[%s418 + $0x18] sm:$0xff]
          %v825 = vld [vmem:[%s418 + $0x20] sm:$0xff]
          %v826 = vld [vmem:[%s418 + $0x28] sm:$0xff]
          %v827 = vld [vmem:[%s418 + $0x30] sm:$0xff]
          %v828 = vld [vmem:[%s418 + $0x38] sm:$0xff]
          %v829 = vld [vmem:[%s418 + $0x40] sm:$0xff]
          %v830 = vld [vmem:[%s418 + $0x48] sm:$0xff]
          %v831 = vld [vmem:[%s418 + $0x50] sm:$0xff]
          %v832 = vld [vmem:[%s418 + $0x58] sm:$0xff]
          %v833 = vld [vmem:[%s418 + $0x60] sm:$0xff]
          %v834 = vld [vmem:[%s418 + $0x68] sm:$0xff]
          %v835 = vld [vmem:[%s418 + $0x70] sm:$0xff]
          %v836 = vld [vmem:[%s418 + $0x78] sm:$0xff]
          %v837 = vlaneseq
          %v838 = vshrl.u32 %v837, 7
          %v839 = vadd.s32 %v838, 8
          %v840 = vadd.s32 %v838, 16
          %v841 = vadd.s32 %v838, 24
          %v842 = vadd.s32 %v838, 32
          %v843 = vadd.s32 %v838, 40
          %v844 = vadd.s32 %v838, 48
          %v845 = vadd.s32 %v838, 56
          %v846 = vadd.s32 %v838, 64
          %v847 = vadd.s32 %v838, 72
          %v848 = vadd.s32 %v838, 80
          %v849 = vadd.s32 %v838, 88
          %v850 = vadd.s32 %v838, 96
          %v851 = vadd.s32 %v838, 104
          %v852 = vadd.s32 %v838, 112
          %v853 = vadd.s32 %v838, 120
          %s854 = smul.u32 %s30, 128
          %v855 = vstv %s854
          %v856 = vadd.s32 %v855, %v838
          %v857 = vadd.s32 %v855, %v839
          %v858 = vadd.s32 %v855, %v840
          %v859 = vadd.s32 %v855, %v841
          %v860 = vadd.s32 %v855, %v842
          %v861 = vadd.s32 %v855, %v843
          %v862 = vadd.s32 %v855, %v844
          %v863 = vadd.s32 %v855, %v845
          %v864 = vadd.s32 %v855, %v846
          %v865 = vadd.s32 %v855, %v847
          %v866 = vadd.s32 %v855, %v848
          %v867 = vadd.s32 %v855, %v849
          %v868 = vadd.s32 %v855, %v850
          %v869 = vadd.s32 %v855, %v851
          %v870 = vadd.s32 %v855, %v852
          %v871 = vadd.s32 %v855, %v853
          %vm872 = vcmp.lt.s32.totalorder %v856, 300
          %vm873 = vcmp.lt.s32.totalorder %v857, 300
          %vm874 = vcmp.lt.s32.totalorder %v858, 300
          %vm875 = vcmp.lt.s32.totalorder %v859, 300
          %vm876 = vcmp.lt.s32.totalorder %v860, 300
          %vm877 = vcmp.lt.s32.totalorder %v861, 300
          %vm878 = vcmp.lt.s32.totalorder %v862, 300
          %vm879 = vcmp.lt.s32.totalorder %v863, 300
          %vm880 = vcmp.lt.s32.totalorder %v864, 300
          %vm881 = vcmp.lt.s32.totalorder %v865, 300
          %vm882 = vcmp.lt.s32.totalorder %v866, 300
          %vm883 = vcmp.lt.s32.totalorder %v867, 300
          %vm884 = vcmp.lt.s32.totalorder %v868, 300
          %vm885 = vcmp.lt.s32.totalorder %v869, 300
          %vm886 = vcmp.lt.s32.totalorder %v870, 300
          %vm887 = vcmp.lt.s32.totalorder %v871, 300
          %v888 = vsel %vm872, %v821, -inf
          %v889 = vsel %vm873, %v822, -inf
          %v890 = vsel %vm874, %v823, -inf
          %v891 = vsel %vm875, %v824, -inf
          %v892 = vsel %vm876, %v825, -inf
          %v893 = vsel %vm877, %v826, -inf
          %v894 = vsel %vm878, %v827, -inf
          %v895 = vsel %vm879, %v828, -inf
          %v896 = vsel %vm880, %v829, -inf
          %v897 = vsel %vm881, %v830, -inf
          %v898 = vsel %vm882, %v831, -inf
          %v899 = vsel %vm883, %v832, -inf
          %v900 = vsel %vm884, %v833, -inf
          %v901 = vsel %vm885, %v834, -inf
          %v902 = vsel %vm886, %v835, -inf
          %v903 = vsel %vm887, %v836, -inf
          %vm904 = vcmask 15360
          %v905 = vsel %vm904, %v888, -inf
          %v906 = vsel %vm904, %v889, -inf
          %v907 = vsel %vm904, %v890, -inf
          %v908 = vsel %vm904, %v891, -inf
          %v909 = vsel %vm904, %v892, -inf
          %v910 = vmax.f32 %v905, %v909
          %v911 = vsel %vm904, %v893, -inf
          %v912 = vmax.f32 %v906, %v911
          %v913 = vsel %vm904, %v894, -inf
          %v914 = vmax.f32 %v907, %v913
          %v915 = vsel %vm904, %v895, -inf
          %v916 = vmax.f32 %v908, %v915
          %v917 = vsel %vm904, %v896, -inf
          %v918 = vmax.f32 %v910, %v917
          %v919 = vsel %vm904, %v897, -inf
          %v920 = vmax.f32 %v912, %v919
          %v921 = vsel %vm904, %v898, -inf
          %v922 = vmax.f32 %v914, %v921
          %v923 = vsel %vm904, %v899, -inf
          %v924 = vmax.f32 %v916, %v923
          %v925 = vsel %vm904, %v900, -inf
          %v926 = vmax.f32 %v918, %v925
          %v927 = vsel %vm904, %v901, -inf
          %v928 = vmax.f32 %v920, %v927
          %v929 = vsel %vm904, %v902, -inf
          %v930 = vmax.f32 %v922, %v929
          %v931 = vsel %vm904, %v903, -inf
          %v932 = vmax.f32 %v924, %v931
          %v933 = vmax.f32 %v926, %v928
          %v934 = vmax.f32 %v930, %v932
          %v935 = vmax.f32 %v933, %v934
          %v936 = vrot.slane %v935, 4
          %v937 = vmax.f32 %v935, %v936
          %v938 = vrot.slane %v937, 2
          %v939 = vmax.f32 %v937, %v938
          %v940 = vrot.slane %v939, 1
          %v941 = vmax.f32 %v939, %v940
          %vm942 = vcmp.eq.f32.partialorder %v888, %v941
          %vm943 = vcmp.eq.f32.partialorder %v889, %v941
          %vm944 = vcmp.eq.f32.partialorder %v890, %v941
          %vm945 = vcmp.eq.f32.partialorder %v891, %v941
          %vm946 = vcmp.eq.f32.partialorder %v892, %v941
          %vm947 = vcmp.eq.f32.partialorder %v893, %v941
          %vm948 = vcmp.eq.f32.partialorder %v894, %v941
          %vm949 = vcmp.eq.f32.partialorder %v895, %v941
          %vm950 = vcmp.eq.f32.partialorder %v896, %v941
          %vm951 = vcmp.eq.f32.partialorder %v897, %v941
          %vm952 = vcmp.eq.f32.partialorder %v898, %v941
          %vm953 = vcmp.eq.f32.partialorder %v899, %v941
          %vm954 = vcmp.eq.f32.partialorder %v900, %v941
          %vm955 = vcmp.eq.f32.partialorder %v901, %v941
          %vm956 = vcmp.eq.f32.partialorder %v902, %v941
          %vm957 = vcmp.eq.f32.partialorder %v903, %v941
          %v958 = vsel %vm942, %v838, 128
          %v959 = vsel %vm943, %v839, 128
          %v960 = vsel %vm944, %v840, 128
          %v961 = vsel %vm945, %v841, 128
          %v962 = vsel %vm946, %v842, 128
          %v963 = vsel %vm947, %v843, 128
          %v964 = vsel %vm948, %v844, 128
          %v965 = vsel %vm949, %v845, 128
          %v966 = vsel %vm950, %v846, 128
          %v967 = vsel %vm951, %v847, 128
          %v968 = vsel %vm952, %v848, 128
          %v969 = vsel %vm953, %v849, 128
          %v970 = vsel %vm954, %v850, 128
          %v971 = vsel %vm955, %v851, 128
          %v972 = vsel %vm956, %v852, 128
          %v973 = vsel %vm957, %v853, 128
          %v974 = vsel %vm904, %v958, 2147483647
          %v975 = vsel %vm904, %v959, 2147483647
          %v976 = vsel %vm904, %v960, 2147483647
          %v977 = vsel %vm904, %v961, 2147483647
          %v978 = vsel %vm904, %v962, 2147483647
          %vm979 = vcmp.lt.s32.totalorder %v974, %v978
          %v980 = vsel %vm979, %v974, %v978
          %v981 = vsel %vm904, %v963, 2147483647
          %vm982 = vcmp.lt.s32.totalorder %v975, %v981
          %v983 = vsel %vm982, %v975, %v981
          %v984 = vsel %vm904, %v964, 2147483647
          %vm985 = vcmp.lt.s32.totalorder %v976, %v984
          %v986 = vsel %vm985, %v976, %v984
          %v987 = vsel %vm904, %v965, 2147483647
          %vm988 = vcmp.lt.s32.totalorder %v977, %v987
          %v989 = vsel %vm988, %v977, %v987
          %v990 = vsel %vm904, %v966, 2147483647
          %vm991 = vcmp.lt.s32.totalorder %v980, %v990
          %v992 = vsel %vm991, %v980, %v990
          %v993 = vsel %vm904, %v967, 2147483647
          %vm994 = vcmp.lt.s32.totalorder %v983, %v993
          %v995 = vsel %vm994, %v983, %v993
          %v996 = vsel %vm904, %v968, 2147483647
          %vm997 = vcmp.lt.s32.totalorder %v986, %v996
          %v998 = vsel %vm997, %v986, %v996
          %v999 = vsel %vm904, %v969, 2147483647
          %vm1000 = vcmp.lt.s32.totalorder %v989, %v999
          %v1001 = vsel %vm1000, %v989, %v999
          %v1002 = vsel %vm904, %v970, 2147483647
          %vm1003 = vcmp.lt.s32.totalorder %v992, %v1002
          %v1004 = vsel %vm1003, %v992, %v1002
          %v1005 = vsel %vm904, %v971, 2147483647
          %vm1006 = vcmp.lt.s32.totalorder %v995, %v1005
          %v1007 = vsel %vm1006, %v995, %v1005
          %v1008 = vsel %vm904, %v972, 2147483647
          %vm1009 = vcmp.lt.s32.totalorder %v998, %v1008
          %v1010 = vsel %vm1009, %v998, %v1008
          %v1011 = vsel %vm904, %v973, 2147483647
          %vm1012 = vcmp.lt.s32.totalorder %v1001, %v1011
          %v1013 = vsel %vm1012, %v1001, %v1011
          %vm1014 = vcmp.lt.s32.totalorder %v1004, %v1007
          %v1015 = vsel %vm1014, %v1004, %v1007
          %vm1016 = vcmp.lt.s32.totalorder %v1010, %v1013
          %v1017 = vsel %vm1016, %v1010, %v1013
          %vm1018 = vcmp.lt.s32.totalorder %v1015, %v1017
          %v1019 = vsel %vm1018, %v1015, %v1017
          %v1020 = vrot.slane %v1019, 4
          %vm1021 = vcmp.lt.s32.totalorder %v1019, %v1020
          %v1022 = vsel %vm1021, %v1019, %v1020
          %v1023 = vrot.slane %v1022, 2
          %vm1024 = vcmp.lt.s32.totalorder %v1022, %v1023
          %v1025 = vsel %vm1024, %v1022, %v1023
          %v1026 = vrot.slane %v1025, 1
          %vm1027 = vcmp.lt.s32.totalorder %v1025, %v1026
          %v1028 = vsel %vm1027, %v1025, %v1026
          %vm1029 = vcmp.eq.s32.totalorder %v838, %v1028
          %vm1030 = vcmp.eq.s32.totalorder %v839, %v1028
          %vm1031 = vcmp.eq.s32.totalorder %v840, %v1028
          %vm1032 = vcmp.eq.s32.totalorder %v841, %v1028
          %vm1033 = vcmp.eq.s32.totalorder %v842, %v1028
          %vm1034 = vcmp.eq.s32.totalorder %v843, %v1028
          %vm1035 = vcmp.eq.s32.totalorder %v844, %v1028
          %vm1036 = vcmp.eq.s32.totalorder %v845, %v1028
          %vm1037 = vcmp.eq.s32.totalorder %v846, %v1028
          %vm1038 = vcmp.eq.s32.totalorder %v847, %v1028
          %vm1039 = vcmp.eq.s32.totalorder %v848, %v1028
          %vm1040 = vcmp.eq.s32.totalorder %v849, %v1028
          %vm1041 = vcmp.eq.s32.totalorder %v850, %v1028
          %vm1042 = vcmp.eq.s32.totalorder %v851, %v1028
          %vm1043 = vcmp.eq.s32.totalorder %v852, %v1028
          %vm1044 = vcmp.eq.s32.totalorder %v853, %v1028
          %v1045 = vsel %vm1029, 1, 0
          %v1046 = vsel %vm1030, 1, 0
          %v1047 = vsel %vm1031, 1, 0
          %v1048 = vsel %vm1032, 1, 0
          %v1049 = vsel %vm1033, 1, 0
          %v1050 = vsel %vm1034, 1, 0
          %v1051 = vsel %vm1035, 1, 0
          %v1052 = vsel %vm1036, 1, 0
          %v1053 = vsel %vm1037, 1, 0
          %v1054 = vsel %vm1038, 1, 0
          %v1055 = vsel %vm1039, 1, 0
          %v1056 = vsel %vm1040, 1, 0
          %v1057 = vsel %vm1041, 1, 0
          %v1058 = vsel %vm1042, 1, 0
          %v1059 = vsel %vm1043, 1, 0
          %v1060 = vsel %vm1044, 1, 0
          %v1061 = vcvt.s32.f32 %v1045
          %v1062 = vcvt.s32.f32 %v1046
          %v1063 = vcvt.s32.f32 %v1047
          %v1064 = vcvt.s32.f32 %v1048
          %v1065 = vcvt.s32.f32 %v1049
          %v1066 = vcvt.s32.f32 %v1050
          %v1067 = vcvt.s32.f32 %v1051
          %v1068 = vcvt.s32.f32 %v1052
          %v1069 = vcvt.s32.f32 %v1053
          %v1070 = vcvt.s32.f32 %v1054
          %v1071 = vcvt.s32.f32 %v1055
          %v1072 = vcvt.s32.f32 %v1056
          %v1073 = vcvt.s32.f32 %v1057
          %v1074 = vcvt.s32.f32 %v1058
          %v1075 = vcvt.s32.f32 %v1059
          %v1076 = vcvt.s32.f32 %v1060
          %v1077 = vpack.c.bf16 %v1062, %v1061
          %v1078 = vpack.c.bf16 %v1064, %v1063
          %v1079 = vpack.c.bf16 %v1066, %v1065
          %v1080 = vpack.c.bf16 %v1068, %v1067
          %v1081 = vpack.c.bf16 %v1070, %v1069
          %v1082 = vpack.c.bf16 %v1072, %v1071
          %v1083 = vpack.c.bf16 %v1074, %v1073
          %v1084 = vpack.c.bf16 %v1076, %v1075
          %1085 = vxpose.xlu0.c.b16.start [1/8] %v1077, 128
          %1086 = vxpose.xlu0.c.b16.cont [2/8] %v1078, 128
          %1087 = vxpose.xlu0.c.b16.cont [3/8] %v1079, 128
          %1088 = vxpose.xlu0.c.b16.cont [4/8] %v1080, 128
          %1089 = vxpose.xlu0.c.b16.cont [5/8] %v1081, 128
          %1090 = vxpose.xlu0.c.b16.cont [6/8] %v1082, 128
          %1091 = vxpose.xlu0.c.b16.cont [7/8] %v1083, 128
          %1092 = vxpose.xlu0.c.b16.end [8/8] %v1084, 128
          %v1093 = vpop.trf.xlu0
          %v1094 = vpop.trf.xlu0
          %v1095 = vpop.trf.xlu0
          %v1096 = vpop.trf.xlu0
          %v1097 = vpop.trf.xlu0
          %v1098 = vpop.trf.xlu0
          %v1099 = vpop.trf.xlu0
          %v1100 = vpop.trf.xlu0
          %1101 = vmatpush.bf16.msra.mxu0 %v817
          %1102 = vmatpush.bf16.msra.mxu0 %v816
          %1103 = vmatpush.bf16.msra.mxu0 %v815
          %1104 = vmatpush.bf16.msra.mxu0 %v814
          %1105 = vmatpush.bf16.msra.mxu0 %v813
          %1106 = vmatpush.bf16.msra.mxu0 %v812
          %1107 = vmatpush.bf16.msra.mxu0 %v811
          %1108 = vmatpush.bf16.msra.mxu0 %v810
          %1109 = vmatmul.bf16.gmra.mxu0 %v1093
          %v1110 = vpop.f32.mrf.mxu0
          %v1111 = vadd.f32 0.0, %v1110
          %v1112 = vpop.f32.mrf.mxu0
          %1113 = vdwg.mxu0
          %v1114 = vld [vmem:[#allocation2] sm:$0x1]
          %vm1115 = vcmp.gt.f32.partialorder %v941, %v1114
          %vm1116 = vmpackc.low %vm1115, %vm1115
          %v1117 = vsel %vm1116, 65537, 0
          %1118 = vxpose.xlu0.c.b16.start [1/8] %v1117, 128
          %1119 = vxpose.xlu0.c.b16.cont [2/8] 0, 128
          %1120 = vxpose.xlu0.c.b16.cont [3/8] 0, 128
          %1121 = vxpose.xlu0.c.b16.cont [4/8] 0, 128
          %1122 = vxpose.xlu0.c.b16.cont [5/8] 0, 128
          %1123 = vxpose.xlu0.c.b16.cont [6/8] 0, 128
          %1124 = vxpose.xlu0.c.b16.cont [7/8] 0, 128
          %1125 = vxpose.xlu0.c.b16.end [8/8] 0, 128
          %v1126 = vpop.trf.xlu0
          %v1127 = vpop.trf.xlu0
          %v1128 = vpop.trf.xlu0
          %v1129 = vpop.trf.xlu0
          %v1130 = vpop.trf.xlu0
          %v1131 = vpop.trf.xlu0
          %v1132 = vpop.trf.xlu0
          %v1133 = vpop.trf.xlu0
          %v1134 = vunpack.c.l.b16 %v1126
          %v1135 = vunpack.c.h.b16 %v1126
          %v1136 = vunpack.c.l.b16 0
          %v1137 = vunpack.c.h.b16 0
          %vm1138 = vcmp.ne.s32.totalorder %v1134, %v1136
          %vm1139 = vcmp.ne.s32.totalorder %v1135, %v1137
          %vm1140 = vmpackc.low %vm1139, %vm1138
          %v1141 = vld [vmem:[#allocation3] sm:$0x3]
          %v1142 = vsel %vm1140, 65537, 0
          %v1143 = vunpack.c.l.b16 %v1142
          %vm1144 = vcmp.ne.s32.totalorder %v1143, 0
          %v1145 = vsel %vm1144, 1, 0
          %1146 = vset.pattern.permute.xlu0 0
          %1147 = vperm.xlu0 %1146, %v1145
          %v1148 = vpop.permute.xlu0 %1147
          %vm1149 = vcmp.eq.s32.totalorder %v1148, 1
          %v1150 = vsel %vm1149, %v1111, %v1141
          %1151 = vst [vmem:[#allocation3] sm:$0x3] %v1150
          %v1152 = vld [vmem:[#allocation2] sm:$0x1]
          %v1153 = vmax.f32 %v1152, %v941
          %vm1154 = vcmask 8192
          %1155 = vst.msk [vmem:[#allocation2] sm:$0x1] %vm1154, %v1153
        $region60: #{bclassifier_forward.1} parent=51 // pred_fallthru
          _
        %p1156 = scmp.eq.s32.totalorder %s29, 1
        // Predicated region
        $region61: #{bclassifier_forward.1} parent=51 // pred_check
          %p1157 = pneg %p1156
        $region62: #{bclassifier_forward.1} parent=51 // pred_check_branch
          %1159 = sbr.rel (%p1157) target = $region64
        $region63: #{bclassifier_forward.1} parent=51 // pred_region
          %v1160 = vld [vmem:[#allocation3] sm:$0x3]
          %v1161 = vpack.c.bf16 %v1160, %v1160
          %1162 = vmatpush.bf16.xpose.msra.mxu0 %v817
          %1163 = vmatpush.bf16.xpose.msra.mxu0 %v816
          %1164 = vmatpush.bf16.xpose.msra.mxu0 %v815
          %1165 = vmatpush.bf16.xpose.msra.mxu0 %v814
          %1166 = vmatpush.bf16.xpose.msra.mxu0 %v813
          %1167 = vmatpush.bf16.xpose.msra.mxu0 %v812
          %1168 = vmatpush.bf16.xpose.msra.mxu0 %v811
          %1169 = vmatpush.bf16.xpose.msra.mxu0 %v810
          %1170 = vmatmul.bf16.gmra.mxu0 %v1161
          %v1171 = vpop.f32.mrf.mxu0
          %v1172 = vadd.f32 0.0, %v1171
          %v1173 = vpop.f32.mrf.mxu0
          %1174 = vdwg.mxu0
          %v1175 = vmul.f32 %v1172, 0.088388346
          %v1176 = vmul.f32 %v1175, 1.442695
          %v1177 = vpow.pop %v1176
          %v1178 = vlaneseq
          %v1179 = vand.u32 %v1178, 127
          %s1180 = smul.u32 %s30, 128
          %v1181 = vstv %s1180
          %v1182 = vadd.s32 %v1181, %v1179
          %vm1183 = vcmp.lt.s32.totalorder %v1182, 300
          %v1184 = vsel %vm1183, %v1177, 0.0
          %1185 = vst [vmem:[%s432] sm:$0x3] %v1184
          %v1186 = vld [vmem:[#allocation4] sm:$0x3]
          %vm1187 = vcmask 1041408
          %v1188 = vsel %vm1187, %v1184, 0.0
          %1189 = vadd.xlane.f32.xlu0 %v1188
          %v1190 = vpop.xlane.xlu0 %1189
          %v1191 = vadd.f32 %v1186, %v1190
          %vm1192 = vcmask 1024
          %1193 = vst.msk [vmem:[#allocation4] sm:$0x3] %vm1192, %v1191
          %v1194 = vld [vmem:[#allocation5] sm:$0x3]
          %v1195 = vpack.c.bf16 %v1184, %v1184
          %1196 = vmatpush.bf16.msra.mxu0 %v523
          %1197 = vmatpush.bf16.msra.mxu0 %v522
          %1198 = vmatpush.bf16.msra.mxu0 %v521
          %1199 = vmatpush.bf16.msra.mxu0 %v520
          %1200 = vmatpush.bf16.msra.mxu0 %v519
          %1201 = vmatpush.bf16.msra.mxu0 %v518
          %1202 = vmatpush.bf16.msra.mxu0 %v517
          %1203 = vmatpush.bf16.msra.mxu0 %v516
          %1204 = vmatmul.bf16.gmra.mxu0 %v1195
          %v1205 = vpop.f32.mrf.mxu0
          %v1206 = vadd.f32 0.0, %v1205
          %v1207 = vpop.f32.mrf.mxu0
          %1208 = vdwg.mxu0
          %v1209 = vadd.f32 %v1194, %v1206
          %1210 = vst [vmem:[#allocation5] sm:$0x3] %v1209
        $region64: #{bclassifier_forward.1} parent=51 // pred_fallthru
          _
        %p1211 = scmp.eq.s32.totalorder %s30, 2
        %p1212 = pnand %p1156, %p1211
        %p1213 = pneg %p1212
        // Predicated region
        $region65: #{bclassifier_forward.1} parent=51 // pred_check
          _
        $region66: #{bclassifier_forward.1} parent=51 // pred_check_branch
          %1215 = sbr.rel (%p1212) target = $region68
        $region67: #{bclassifier_forward.1} parent=51 // pred_region
          %v1216 = vld [vmem:[#allocation4] sm:$0x3]
          %vm1217 = vcmask 1024
          %1218 = vst.msk [vmem:[%s11] sm:$0x3] %vm1217, %v1216
          %v1219 = vld [vmem:[#allocation5] sm:$0x3]
          %v1220 = vrcp.pop %v1216
          %v1221 = vmul.f32 %v1216, %v1220
          %v1222 = vsub.f32 1.0, %v1221
          %v1223 = vmul.f32 %v1220, %v1222
          %v1224 = vadd.f32 %v1220, %v1223
          %vm1225 = vweird.f32 %v1216
          %vm1226 = vweird.f32 %v1220
          %vm1227 = vmor %vm1225, %vm1226
          %v1228 = vsel %vm1227, %v1220, %v1224
          %v1229 = vand.u32 2147483647, %v1216
          %vm1230 = vcmp.eq.f32.partialorder %v1229, 8.507059e+37
          %v1231 = vand.u32 %v1216, 2147483648
          %v1232 = vor.u32 1.1754944e-38, %v1231
          %v1233 = vsel %vm1230, %v1232, %v1228
          %v1234 = vmul.f32 1.0, %v1233
          %1236 = vset.pattern.permute.xlu0 0
          %1237 = vperm.xlu0 %1236, %v1234
          %v1238 = vpop.permute.xlu0 %1237
          %v1240 = vmul.f32 %v1219, %v1238
          %1241 = vst [vmem:[#allocation8] sm:$0x3] %v1240
          %v1243 = vrot.slane %v1240, 1
          %v1245 = vpack.c.bf16 %v1240, %v1240
          %v1246 = vpack.c.bf16 %v1243, %v1243
          %v1247 = vld [vmem:[%s6] sm:$0xf]
          %v1248 = vld [vmem:[%s6 + $0x4] sm:$0xf]
          %v1249 = vld [vmem:[%s6 + $0x8] sm:$0xf]
          %v1250 = vld [vmem:[%s6 + $0xc] sm:$0xf]
          %v1251 = vld [vmem:[%s6 + $0x10] sm:$0xf]
          %v1252 = vld [vmem:[%s6 + $0x14] sm:$0xf]
          %v1253 = vld [vmem:[%s6 + $0x18] sm:$0xf]
          %v1254 = vld [vmem:[%s6 + $0x1c] sm:$0xf]
          %v1255 = vld [vmem:[%s6 + $0x20] sm:$0xf]
          %v1256 = vld [vmem:[%s6 + $0x24] sm:$0xf]
          %v1257 = vld [vmem:[%s6 + $0x28] sm:$0xf]
          %v1258 = vld [vmem:[%s6 + $0x2c] sm:$0xf]
          %v1259 = vld [vmem:[%s6 + $0x30] sm:$0xf]
          %v1260 = vld [vmem:[%s6 + $0x34] sm:$0xf]
          %v1261 = vld [vmem:[%s6 + $0x38] sm:$0xf]
          %v1262 = vld [vmem:[%s6 + $0x3c] sm:$0xf]
          %v1263 = vld [vmem:[%s6 + $0x40] sm:$0xf]
          %v1264 = vld [vmem:[%s6 + $0x44] sm:$0xf]
          %v1265 = vld [vmem:[%s6 + $0x48] sm:$0xf]
          %v1266 = vld [vmem:[%s6 + $0x4c] sm:$0xf]
          %v1267 = vld [vmem:[%s6 + $0x50] sm:$0xf]
          %v1268 = vld [vmem:[%s6 + $0x54] sm:$0xf]
          %v1269 = vld [vmem:[%s6 + $0x58] sm:$0xf]
          %v1270 = vld [vmem:[%s6 + $0x5c] sm:$0xf]
          %v1271 = vld [vmem:[%s6 + $0x60] sm:$0xf]
          %v1272 = vld [vmem:[%s6 + $0x64] sm:$0xf]
          %v1273 = vld [vmem:[%s6 + $0x68] sm:$0xf]
          %v1274 = vld [vmem:[%s6 + $0x6c] sm:$0xf]
          %v1275 = vld [vmem:[%s6 + $0x70] sm:$0xf]
          %v1276 = vld [vmem:[%s6 + $0x74] sm:$0xf]
          %v1277 = vld [vmem:[%s6 + $0x78] sm:$0xf]
          %v1278 = vld [vmem:[%s6 + $0x7c] sm:$0xf]
          %v1279 = vld [vmem:[%s7] sm:$0x1]
          %v1312 = vunpack.c.l.b16 %v1247
          %v1313 = vunpack.c.l.b16 %v1248
          %v1314 = vunpack.c.l.b16 %v1249
          %v1315 = vunpack.c.l.b16 %v1250
          %v1316 = vunpack.c.l.b16 %v1251
          %v1317 = vunpack.c.l.b16 %v1252
          %v1318 = vunpack.c.l.b16 %v1253
          %v1319 = vunpack.c.l.b16 %v1254
          %v1320 = vunpack.c.l.b16 %v1255
          %v1321 = vunpack.c.l.b16 %v1256
          %v1322 = vunpack.c.l.b16 %v1257
          %v1323 = vunpack.c.l.b16 %v1258
          %v1324 = vunpack.c.l.b16 %v1259
          %v1325 = vunpack.c.l.b16 %v1260
          %v1326 = vunpack.c.l.b16 %v1261
          %v1327 = vunpack.c.l.b16 %v1262
          %v1328 = vunpack.c.l.b16 %v1263
          %v1329 = vunpack.c.l.b16 %v1264
          %v1330 = vunpack.c.l.b16 %v1265
          %v1331 = vunpack.c.l.b16 %v1266
          %v1332 = vunpack.c.l.b16 %v1267
          %v1333 = vunpack.c.l.b16 %v1268
          %v1334 = vunpack.c.l.b16 %v1269
          %v1335 = vunpack.c.l.b16 %v1270
          %v1336 = vunpack.c.l.b16 %v1271
          %v1337 = vunpack.c.l.b16 %v1272
          %v1338 = vunpack.c.l.b16 %v1273
          %v1339 = vunpack.c.l.b16 %v1274
          %v1340 = vunpack.c.l.b16 %v1275
          %v1341 = vunpack.c.l.b16 %v1276
          %v1342 = vunpack.c.l.b16 %v1277
          %v1343 = vunpack.c.l.b16 %v1278
          %v1344 = vpack.c.b16 %v1313, %v1312
          %v1345 = vpack.c.b16 %v1315, %v1314
          %v1346 = vpack.c.b16 %v1317, %v1316
          %v1347 = vpack.c.b16 %v1319, %v1318
          %v1348 = vpack.c.b16 %v1321, %v1320
          %v1349 = vpack.c.b16 %v1323, %v1322
          %v1350 = vpack.c.b16 %v1325, %v1324
          %v1351 = vpack.c.b16 %v1327, %v1326
          %v1352 = vpack.c.b16 %v1329, %v1328
          %v1353 = vpack.c.b16 %v1331, %v1330
          %v1354 = vpack.c.b16 %v1333, %v1332
          %v1355 = vpack.c.b16 %v1335, %v1334
          %v1356 = vpack.c.b16 %v1337, %v1336
          %v1357 = vpack.c.b16 %v1339, %v1338
          %v1358 = vpack.c.b16 %v1341, %v1340
          %v1359 = vpack.c.b16 %v1343, %v1342
          %1376 = vmatpush.bf16.msra.mxu0 %v1351
          %1377 = vmatpush.bf16.msra.mxu0 %v1350
          %1378 = vmatpush.bf16.msra.mxu0 %v1349
          %1379 = vmatpush.bf16.msra.mxu0 %v1348
          %1380 = vmatpush.bf16.msra.mxu0 %v1347
          %1381 = vmatpush.bf16.msra.mxu0 %v1346
          %1382 = vmatpush.bf16.msra.mxu0 %v1345
          %1383 = vmatpush.bf16.msra.mxu0 %v1344
          %1384 = vmatmul.bf16.gmra.mxu0 %v1245
          %v1385 = vpop.f32.mrf.mxu0
          %v1386 = vadd.f32 %v1279, %v1385
          %v1387 = vpop.f32.mrf.mxu0
          %1388 = vdwg.mxu0
          %1389 = vmatpush.bf16.msra.mxu0 %v1359
          %1390 = vmatpush.bf16.msra.mxu0 %v1358
          %1391 = vmatpush.bf16.msra.mxu0 %v1357
          %1392 = vmatpush.bf16.msra.mxu0 %v1356
          %1393 = vmatpush.bf16.msra.mxu0 %v1355
          %1394 = vmatpush.bf16.msra.mxu0 %v1354
          %1395 = vmatpush.bf16.msra.mxu0 %v1353
          %1396 = vmatpush.bf16.msra.mxu0 %v1352
          %1397 = vmatmul.bf16.gmra.mxu0 %v1246
          %v1398 = vpop.f32.mrf.mxu0
          %v1399 = vadd.f32 %v1386, %v1398
          %v1400 = vpop.f32.mrf.mxu0
          %1401 = vdwg.mxu0
          %vm1402 = vcmask 8192
          %1403 = vst.msk [vmem:[#allocation6] sm:$0x1] %vm1402, %v1399
        $region68: #{bclassifier_forward.1} parent=51 // pred_fallthru
          _
        %s1404 = smul.u32 %s30, %s29
        %p1405 = scmp.lt.s32.totalorder %s1404, 2
        %s1406 = scalar_select %p1405, %s1404, 2
        %s1407 = smul.addr %s1406, 2
        %s1408 = scalar_lea.vmem %s9, %s1407
        // Predicated region
        $region69: #{bclassifier_forward.1} parent=51 // pred_check
          %p1409 = pneg %p232
        $region70: #{bclassifier_forward.1} parent=51 // pred_check_branch
          %1411 = sbr.rel (%p1409) target = $region72
        $region71: #{bclassifier_forward.1} parent=51 // pred_region
          %1413 = vsyncadd [#allocation7], 0
          %s1415 = sshll.u32 [#allocation6], 4
          %s1416 = int_to_ptr.vmem [resolvable:$true] %s1415
          %s1417 = sshll.u32 %s8, 4
          %s1418 = int_to_ptr.hbm [resolvable:$true] %s1417
          %1420 = dma.vmem_to_hbm [thread:$0]  %s1416, 16, %s1418, [#allocation7]
        $region72: #{bclassifier_forward.1} parent=51 // pred_fallthru
          _
        // Predicated region
        $region73: #{bclassifier_forward.1} parent=51 // pred_check
          %p1421 = pneg %p260
        $region74: #{bclassifier_forward.1} parent=51 // pred_check_branch
          %1423 = sbr.rel (%p1421) target = $region76
        $region75: #{bclassifier_forward.1} parent=51 // pred_region
          %s1424 = smul.u32 %s30, %s29
        $region76: #{bclassifier_forward.1} parent=51 // pred_fallthru
          _
        // Predicated region
        $region77: #{bclassifier_forward.1} parent=51 // pred_check
          %p1425 = pneg %p281
        $region78: #{bclassifier_forward.1} parent=51 // pred_check_branch
          %1427 = sbr.rel (%p1425) target = $region80
        $region79: #{bclassifier_forward.1} parent=51 // pred_region
          %1429 = vsyncadd [#allocation9], 0
          %s1431 = sshll.u32 [#allocation8], 4
          %s1432 = int_to_ptr.vmem [resolvable:$true] %s1431
          %s1433 = sshll.u32 %s10, 4
          %s1434 = int_to_ptr.hbm [resolvable:$true] %s1433
          %1436 = dma.vmem_to_hbm [thread:$0]  %s1432, 32, %s1434, [#allocation9]
        $region80: #{bclassifier_forward.1} parent=51 // pred_fallthru
          _
        // Predicated region
        $region81: #{bclassifier_forward.1} parent=51 // pred_check
          %p1437 = pneg %p302
        $region82: #{bclassifier_forward.1} parent=51 // pred_check_branch
          %1439 = sbr.rel (%p1437) target = $region84
        $region83: #{bclassifier_forward.1} parent=51 // pred_region
          _
        $region84: #{bclassifier_forward.1} parent=51 // pred_fallthru
          _
        // Predicated region
        $region85: #{bclassifier_forward.1} parent=51 // pred_check
          %p1440 = pneg %p232
        $region86: #{bclassifier_forward.1} parent=51 // pred_check_branch
          %1442 = sbr.rel (%p1440) target = $region88
        $region87: #{bclassifier_forward.1} parent=51 // pred_region
          %1444 = dma.done [#allocation7], 16
        $region88: #{bclassifier_forward.1} parent=51 // pred_fallthru
          _
        // Predicated region
        $region89: #{bclassifier_forward.1} parent=51 // pred_check
          %p1445 = pneg %p281
        $region90: #{bclassifier_forward.1} parent=51 // pred_check_branch
          %1447 = sbr.rel (%p1445) target = $region92
        $region91: #{bclassifier_forward.1} parent=51 // pred_region
          %1449 = dma.done [#allocation9], 32
        $region92: #{bclassifier_forward.1} parent=51 // pred_fallthru
          _
        // Predicated region
        $region93: #{bclassifier_forward.1} parent=51 // pred_check
          %p1450 = pneg %p302
        $region94: #{bclassifier_forward.1} parent=51 // pred_check_branch
          %1452 = sbr.rel (%p1450) target = $region96
        $region95: #{bclassifier_forward.1} parent=51 // pred_region
          _
        $region96: #{bclassifier_forward.1} parent=51 // pred_fallthru
          _
      $region52: #{bclassifier_forward.1} parent=5 // pred_fallthru
        _
      %p1453 = scmp.le.s32.totalorder 2, %s20
      // Predicated region
      $region97: #{bclassifier_forward.1} parent=5 // pred_check
        %p1454 = pneg %p1453
      $region98: #{bclassifier_forward.1} parent=5 // pred_check_branch
        %1456 = sbr.rel (%p1454) target = $region100
      $region99: #{bclassifier_forward.1} parent=5 // pred_region
        %s1457 = ssub.s32 %s20, 2
        // Predicated region
        $region101: #{bclassifier_forward.1} parent=99 // pred_check
          %p1458 = pneg %p266
        $region102: #{bclassifier_forward.1} parent=99 // pred_check_branch
          %1460 = sbr.rel (%p1458) target = $region104
        $region103: #{bclassifier_forward.1} parent=99 // pred_region
          %s1461 = smul.u32 %s32, %s31
          %p1462 = scmp.lt.s32.totalorder %s1461, 2
          %s1463 = scalar_select %p1462, %s1461, 2
          %s1464 = smul.addr %s1463, 2
          %s1465 = scalar_lea.vmem %s9, %s1464
        $region104: #{bclassifier_forward.1} parent=99 // pred_fallthru
          _
      $region100: #{bclassifier_forward.1} parent=5 // pred_fallthru
        _
    $region6: #{bclassifier_forward.1} parent=1 // loop_footer
      %s24 = sadd.s32 1, %s20
    $region7: #{bclassifier_forward.1} parent=1 // loop_footer_branch
      %19 = sbr.rel target = $region3
    $region8: #{bclassifier_forward.1} parent=1 // loop_exit
      _
    %1466 = vsyncpa [#allocation7], 1
    %s1467 = scalar_lea.sflag [#allocation7], 1
    %1468 = vsyncpa %s1467, 1
    %1469 = vsyncpa [#allocation9], 1

</llo_original>
